<compile_context>
chip_gen: v7x
topology: tpu7x:2x2x1
jax: 0.10.0
libtpu: 0.0.40
codegen_flags: <defaults>
</compile_context>

<pallas_src>
import math

import jax
import jax.numpy as jnp
from jax.experimental import pallas as pl
from jax.experimental.pallas import tpu as pltpu

# ----------------------------- config (small) --------------------------------
B = 2                  # batch
S = 16                 # sequence length
HIDDEN = 64            # hidden_size
NUM_HEADS = 4          # num_attention_heads
HEAD_DIM = HIDDEN // NUM_HEADS           # 16
NUM_KV_HEADS = 2       # num_key_value_heads
GROUPS = NUM_HEADS // NUM_KV_HEADS       # 2
K_COMP = 8             # k_compressed_dim_per_head
V_COMP = 8             # v_compressed_dim_per_head
ROPE_THETA = 10000.0
K_BITS = 16
V_BITS = 16

Q_W = NUM_HEADS * HEAD_DIM               # 64
KV_W = NUM_KV_HEADS * HEAD_DIM           # 32
KC_W = NUM_KV_HEADS * K_COMP             # 16
VC_W = NUM_KV_HEADS * V_COMP             # 16
TILE = 128                               # one lane tile
PROJ_W = 2 * TILE                        # 256 = exactly 2 lane tiles


# ----------------------------- fused Pallas kernel ---------------------------
def _fused_forward_kernel(x_ref, w_in_ref, w_b_ref, w_o_ref,
                          cos_ref, sin_ref, mask_ref,
                          out_ref, mse_ref):
    f32 = jnp.float32
    bf16 = jnp.bfloat16

    # ---- fused q/k/v/k_a/v_a projection: one (B*S, HIDDEN)@(HIDDEN, 256) dot.
    #   lane tile 0 = [ q(64) | k(32) | v(32) ]
    #   lane tile 1 = [ q_rot(64) | k_rot(32) | k_a(16) | v_a(16) ]
    proj = jnp.dot(x_ref[...], w_in_ref[...], preferred_element_type=f32)
    pb = proj[:, :TILE]          # 128-aligned slices: no lane relayout
    pr = proj[:, TILE:]

    # ---- fused k_proj_b / v_proj_b on the whole second lane tile (weight rows
    # are zero except the k_a / v_a rows).  Output layout:
    #   lane tile 0 = [ 0(64) | k_rec(32) | v_rec(32) ]
    #   lane tile 1 = [ 0(64) | k_rec_rot(32) | 0(32) ]
    rec = jnp.dot(pr.astype(bf16), w_b_ref[...], preferred_element_type=f32)
    rb = rec[:, :TILE]
    rr = rec[:, TILE:]

    # ---- RoPE: pure full-tile VPU fma (cos=1 / sin=0 in the v columns) -------
    cos = cos_ref[...]           # (B*S, 128) f32
    sin = sin_ref[...]
    roped = pb * cos + pr * sin          # [ q_rope | k_rope | v      ]
    roped_r = rb * cos + rr * sin        # [ 0      | kr_rope | v_rec ]

    # ---- MSE reconstruction losses (f32; cols 0-63 hold q and are masked out)
    d = roped - roped_r
    d2 = d * d
    col = jax.lax.broadcasted_iota(jnp.int32, (1, TILE), 1)
    kmask = ((col >= Q_W) & (col < Q_W + KV_W)).astype(f32)
    vmask = (col >= Q_W + KV_W).astype(f32)
    inv_n = 1.0 / float(B * NUM_KV_HEADS * S * HEAD_DIM)

    def _sum2d(a):
        return jnp.sum(jnp.sum(a, axis=1, keepdims=True), axis=0, keepdims=True)

    k_sum = _sum2d(d2 * kmask)
    v_sum = _sum2d(d2 * vmask)
    mse_ref[...] = (jnp.concatenate([k_sum, v_sum], axis=1)
                    * inv_n).astype(mse_ref.dtype)

    # ---- GQA attention, batched over heads -----------------------------------
    # Both batch elements share the key axis; cross-batch positions are removed
    # by the additive block-diagonal mask built in the wrapper.
    roped_bf = roped.astype(bf16)
    q_list = [roped_bf[:, h * HEAD_DIM:(h + 1) * HEAD_DIM]
              for h in range(NUM_HEADS)]
    k_list = [roped_bf[:, Q_W + g * HEAD_DIM:Q_W + (g + 1) * HEAD_DIM]
              for g in range(NUM_KV_HEADS)]
    v_list = [roped_bf[:, Q_W + KV_W + g * HEAD_DIM:Q_W + KV_W + (g + 1) * HEAD_DIM]
              for g in range(NUM_KV_HEADS)]
    q_hm = jnp.stack(q_list, axis=0)                                    # (H, B*S, D)
    k_hm = jnp.stack([k_list[h // GROUPS] for h in range(NUM_HEADS)], axis=0)
    v_hm = jnp.stack([v_list[h // GROUPS] for h in range(NUM_HEADS)], axis=0)

    scale = 1.0 / math.sqrt(HEAD_DIM)
    s = jnp.einsum('hqd,hkd->hqk', q_hm, k_hm,
                   preferred_element_type=f32) * scale                  # (H, B*S, B*S)
    s = s + mask_ref[...][None, :, :]
    s = s - jnp.max(s, axis=-1, keepdims=True)
    p = jnp.exp(s)
    p = p * pl.reciprocal(jnp.sum(p, axis=-1, keepdims=True), approx=True)

    # ---- o_proj folded into the attention dots:  out = sum_h p_h @ (v_h @ Wo[h])
    vw = jnp.einsum('hkd,hdn->hkn', v_hm, w_o_ref[...],
                    preferred_element_type=f32)                         # (H, B*S, HIDDEN)
    oh = jnp.einsum('hqk,hkn->hqn', p.astype(bf16), vw.astype(bf16),
                    preferred_element_type=f32)                         # (H, B*S, HIDDEN)
    out_ref[...] = jnp.sum(oh, axis=0).astype(out_ref.dtype)            # (B*S, HIDDEN)


# ----------------------------- host-side weight prep -------------------------
def _rotate_half_cols(w, head_dim):
    """Signed column permutation so that (x @ w') == rotate_half(x @ w) per head."""
    half = head_dim // 2
    cols = []
    for c in range(0, w.shape[1], head_dim):
        blk = w[:, c:c + head_dim]
        cols.append(jnp.concatenate([-blk[:, half:], blk[:, :half]], axis=1))
    return jnp.concatenate(cols, axis=1)


def prepare_fused_params(params):
    """Transpose + fuse the nn.Linear (OUT, IN) weights once, outside jit."""
    f = jnp.float32
    wq = params["q_proj"].T.astype(f)          # (HIDDEN, 64)
    wk = params["k_proj"].T.astype(f)          # (HIDDEN, 32)
    wv = params["v_proj"].T.astype(f)          # (HIDDEN, 32)
    wka = params["k_proj_a"].T.astype(f)       # (HIDDEN, 16)
    wva = params["v_proj_a"].T.astype(f)       # (HIDDEN, 16)
    wkb = params["k_proj_b"].T.astype(f)       # (16, 32)
    wvb = params["v_proj_b"].T.astype(f)       # (16, 32)

    # lane tile 0 = [q | k | v], lane tile 1 = [q_rot | k_rot | k_a | v_a]
    w_in = jnp.concatenate(
        [wq, wk, wv,
         _rotate_half_cols(wq, HEAD_DIM), _rotate_half_cols(wk, HEAD_DIM),
         wka, wva], axis=1)                    # (HIDDEN, 256)

    # Second dot: LHS = lane tile 1 of proj (rows: q_rot 0-63 | k_rot 64-95 |
    # k_a 96-111 | v_a 112-127).  Output: tile0 [pad64 | k_rec | v_rec],
    # tile1 [pad64 | k_rec_rot | pad32]  — k_rec/v_rec share lane offsets with k/v.
    w_b = jnp.zeros((TILE, PROJ_W), f)
    w_b = w_b.at[96:96 + KC_W, Q_W:Q_W + KV_W].set(wkb)
    w_b = w_b.at[96:96 + KC_W, TILE + Q_W:TILE + Q_W + KV_W].set(
        _rotate_half_cols(wkb, HEAD_DIM))
    w_b = w_b.at[96 + KC_W:TILE, Q_W + KV_W:TILE].set(wvb)

    # o_proj.T reshaped head-major: (H, D, HIDDEN)
    w_o3 = params["o_proj"].T.astype(f).reshape(NUM_HEADS, HEAD_DIM, HIDDEN)

    return {"w_in": w_in.astype(jnp.bfloat16),
            "w_b": w_b.astype(jnp.bfloat16),
            "w_o3": w_o3.astype(jnp.bfloat16)}


# ----------------------------- JAX glue ---------------------------------------
def rotary_cos_sin(position_ids, head_dim, base):
    """MistralRotaryEmbedding gathered at position_ids.  Returns (B, S, D)."""
    inv_freq = 1.0 / (base ** (jnp.arange(0, head_dim, 2, dtype=jnp.float32)
                               / head_dim))
    freqs = position_ids.astype(jnp.float32)[..., None] * inv_freq[None, None, :]
    emb = jnp.concatenate([freqs, freqs], axis=-1)
    return jnp.cos(emb), jnp.sin(emb)


def forward(fused_params, hidden_states, attention_mask, position_ids):
    bsz, q_len, hidden = hidden_states.shape
    n = bsz * q_len
    x2d = hidden_states.reshape(n, hidden).astype(jnp.bfloat16)

    cos, sin = rotary_cos_sin(position_ids, HEAD_DIM, ROPE_THETA)       # (B, S, D)
    cos2 = cos.reshape(n, HEAD_DIM)
    sin2 = sin.reshape(n, HEAD_DIM)
    ones = jnp.ones((n, KV_W), jnp.float32)
    zeros = jnp.zeros((n, KV_W), jnp.float32)
    # layout matched to lane tile 0 = [q(64) | k(32) | v(32)]
    cos_base = jnp.concatenate([jnp.tile(cos2, (1, NUM_HEADS)),
                                jnp.tile(cos2, (1, NUM_KV_HEADS)), ones], axis=1)
    sin_base = jnp.concatenate([jnp.tile(sin2, (1, NUM_HEADS)),
                                jnp.tile(sin2, (1, NUM_KV_HEADS)), zeros], axis=1)

    # Block-diagonal additive mask over the shared (B*S) key axis.
    # NOTE: assumes a head-broadcast (B, 1, S, S) additive mask.
    mask_b = attention_mask[:, 0].astype(jnp.float32)                   # (B, S, S)
    big_mask = jnp.full((n, n), -1e9, jnp.float32)
    for b in range(bsz):
        big_mask = big_mask.at[b * q_len:(b + 1) * q_len,
                               b * q_len:(b + 1) * q_len].set(mask_b[b])

    flops = 2 * (n * hidden * PROJ_W + n * TILE * PROJ_W
                 + NUM_HEADS * n * n * HEAD_DIM
                 + NUM_HEADS * n * HEAD_DIM * hidden
                 + NUM_HEADS * n * n * hidden)
    bytes_accessed = (x2d.size * 2 + fused_params["w_in"].size * 2
                      + fused_params["w_b"].size * 2 + fused_params["w_o3"].size * 2
                      + cos_base.size * 4 + sin_base.size * 4 + big_mask.size * 4
                      + n * hidden * 4 + 8)
    transcendentals = NUM_HEADS * n * n + NUM_HEADS * n

    vmem = pltpu.MemorySpace.VMEM
    out2d, mses = pl.pallas_call(
        _fused_forward_kernel,
        out_shape=(
            jax.ShapeDtypeStruct((n, hidden), jnp.float32),
            jax.ShapeDtypeStruct((1, 2), jnp.float32),
        ),
        in_specs=[pl.BlockSpec(memory_space=vmem)] * 7,
        out_specs=(pl.BlockSpec(memory_space=vmem),
                   pl.BlockSpec(memory_space=vmem)),
        cost_estimate=pl.CostEstimate(flops=flops,
                                      transcendentals=transcendentals,
                                      bytes_accessed=bytes_accessed),
    )(x2d, fused_params["w_in"], fused_params["w_b"], fused_params["w_o3"],
      cos_base, sin_base, big_mask)

    return out2d.reshape(bsz, q_len, hidden), mses[0, 0], mses[0, 1]


# ----------------------------- pure-JAX reference -----------------------------
def _rotate_half_ref(x):
    d = x.shape[-1]
    return jnp.concatenate([-x[..., d // 2:], x[..., :d // 2]], axis=-1)


def reference_forward(params, x, mask, position_ids):
    hi = jax.lax.Precision.HIGHEST

    def lin(a, w):
        return jnp.dot(a, w.T, precision=hi)

    x2 = x.reshape(B * S, HIDDEN)
    q = lin(x2, params["q_proj"]).reshape(B, S, NUM_HEADS, HEAD_DIM).transpose(0, 2, 1, 3)
    ko = lin(x2, params["k_proj"]).reshape(B, S, NUM_KV_HEADS, HEAD_DIM).transpose(0, 2, 1, 3)
    vo = lin(x2, params["v_proj"]).reshape(B, S, NUM_KV_HEADS, HEAD_DIM).transpose(0, 2, 1, 3)
    kc = lin(x2, params["k_proj_a"]).reshape(B, S, NUM_KV_HEADS, K_COMP).transpose(0, 2, 1, 3)
    vc = lin(x2, params["v_proj_a"]).reshape(B, S, NUM_KV_HEADS, V_COMP).transpose(0, 2, 1, 3)
    kr = lin(kc.transpose(0, 2, 1, 3).reshape(B * S, NUM_KV_HEADS * K_COMP),
             params["k_proj_b"]).reshape(B, S, NUM_KV_HEADS, HEAD_DIM).transpose(0, 2, 1, 3)
    vr = lin(vc.transpose(0, 2, 1, 3).reshape(B * S, NUM_KV_HEADS * V_COMP),
             params["v_proj_b"]).reshape(B, S, NUM_KV_HEADS, HEAD_DIM).transpose(0, 2, 1, 3)

    cos, sin = rotary_cos_sin(position_ids, HEAD_DIM, ROPE_THETA)

    def rope(t):
        return t * cos[:, None] + _rotate_half_ref(t) * sin[:, None]

    q = rope(q)
    ko_r = rope(ko)
    kr_r = rope(kr)
    k_mse = jnp.mean((ko_r - kr_r) ** 2)
    v_mse = jnp.mean((vo - vr) ** 2)

    kk = jnp.repeat(ko_r, GROUPS, axis=1)
    vv = jnp.repeat(vo, GROUPS, axis=1)
    s_ = jnp.einsum("bhqd,bhkd->bhqk", q, kk, precision=hi) / math.sqrt(HEAD_DIM)
    s_ = s_ + mask
    p = jax.nn.softmax(s_, axis=-1)
    o = jnp.einsum("bhqk,bhkd->bhqd", p, vv, precision=hi)
    o = o.transpose(0, 2, 1, 3).reshape(B * S, HIDDEN)
    return lin(o, params["o_proj"]).reshape(B, S, HIDDEN), k_mse, v_mse


# ----------------------------- main -------------------------------------------
if __name__ == "__main__":
    key = jax.random.PRNGKey(0)
    keys = jax.random.split(key, 9)

    def w(k, shape):
        return (0.02 * jax.random.normal(k, shape)).astype(jnp.float32)

    params = {
        "q_proj":   w(keys[0], (NUM_HEADS * HEAD_DIM, HIDDEN)),
        "k_proj":   w(keys[1], (NUM_KV_HEADS * HEAD_DIM, HIDDEN)),
        "v_proj":   w(keys[2], (NUM_KV_HEADS * HEAD_DIM, HIDDEN)),
        "k_proj_a": w(keys[3], (NUM_KV_HEADS * K_COMP, HIDDEN)),
        "v_proj_a": w(keys[4], (NUM_KV_HEADS * V_COMP, HIDDEN)),
        "k_proj_b": w(keys[5], (NUM_KV_HEADS * HEAD_DIM, NUM_KV_HEADS * K_COMP)),
        "v_proj_b": w(keys[6], (NUM_KV_HEADS * HEAD_DIM, NUM_KV_HEADS * V_COMP)),
        "o_proj":   w(keys[7], (HIDDEN, HIDDEN)),
    }

    hidden_states = jax.random.normal(keys[8], (B, S, HIDDEN), dtype=jnp.float32)
    position_ids = jnp.broadcast_to(jnp.arange(S, dtype=jnp.int32), (B, S))
    causal = jnp.tril(jnp.ones((S, S), dtype=bool))
    attention_mask = jnp.where(causal, 0.0, -1e9).astype(jnp.float32)
    attention_mask = jnp.broadcast_to(attention_mask[None, None], (B, 1, S, S))

    fused_params = prepare_fused_params(params)          # one-time, outside jit

    fwd = jax.jit(forward)
    out, k_mse, v_mse = fwd(fused_params, hidden_states, attention_mask,
                            position_ids)
    jax.block_until_ready((out, k_mse, v_mse))

    ref_out, ref_kmse, ref_vmse = reference_forward(
        params, hidden_states, attention_mask, position_ids)

    assert out.shape == (B, S, HIDDEN)
    assert jnp.allclose(out, ref_out, atol=3e-3, rtol=3e-2), \
        float(jnp.max(jnp.abs(out - ref_out)))
    assert jnp.allclose(k_mse, ref_kmse, atol=1e-3, rtol=3e-2), \
        (float(k_mse), float(ref_kmse))
    assert jnp.allclose(v_mse, ref_vmse, atol=1e-3, rtol=3e-2), \
        (float(v_mse), float(ref_vmse))

    print("KERNEL_OK")
</pallas_src>

<mosaic_0001>
module attributes {stable_mosaic.version = 11 : i64} {
  func.func @_fused_forward_kernel(%arg0: memref<32x64xbf16, #tpu.memory_space<vmem>>, %arg1: memref<64x256xbf16, #tpu.memory_space<vmem>>, %arg2: memref<128x256xbf16, #tpu.memory_space<vmem>>, %arg3: memref<4x16x64xbf16, #tpu.memory_space<vmem>>, %arg4: memref<32x128xf32, #tpu.memory_space<vmem>>, %arg5: memref<32x128xf32, #tpu.memory_space<vmem>>, %arg6: memref<32x32xf32, #tpu.memory_space<vmem>>, %arg7: memref<32x64xf32, #tpu.memory_space<vmem>>, %arg8: memref<1x2xf32, #tpu.memory_space<vmem>>) attributes {dimension_semantics = [], scalar_prefetch = 0 : i64, scratch_operands = 0 : i64, tpu.core_type = #tpu.core_type<tc>} {
    %c0 = arith.constant 0 : index
    %c0_0 = arith.constant 0 : index
    %0 = vector.load %arg0[%c0, %c0_0] : memref<32x64xbf16, #tpu.memory_space<vmem>>, vector<32x64xbf16>
    %c0_1 = arith.constant 0 : index
    %c0_2 = arith.constant 0 : index
    %1 = vector.load %arg1[%c0_1, %c0_2] : memref<64x256xbf16, #tpu.memory_space<vmem>>, vector<64x256xbf16>
    %cst = arith.constant dense<0.000000e+00> : vector<32x256xf32>
    %2 = tpu.matmul %0, %1, %cst {dimension_numbers = #tpu.dot_dimension_numbers<[1], [0], [0], [1], [0, 0, 1, 1], [], []>} : vector<32x64xbf16>, vector<64x256xbf16>, vector<32x256xf32> -> vector<32x256xf32>
    %3 = vector.extract_strided_slice %2 {offsets = [0, 0], sizes = [32, 128], strides = [1, 1]} : vector<32x256xf32> to vector<32x128xf32>
    %4 = vector.extract_strided_slice %2 {offsets = [0, 128], sizes = [32, 128], strides = [1, 1]} : vector<32x256xf32> to vector<32x128xf32>
    %5 = arith.truncf %4 : vector<32x128xf32> to vector<32x128xbf16>
    %c0_3 = arith.constant 0 : index
    %c0_4 = arith.constant 0 : index
    %6 = vector.load %arg2[%c0_3, %c0_4] : memref<128x256xbf16, #tpu.memory_space<vmem>>, vector<128x256xbf16>
    %cst_5 = arith.constant dense<0.000000e+00> : vector<32x256xf32>
    %7 = tpu.matmul %5, %6, %cst_5 {dimension_numbers = #tpu.dot_dimension_numbers<[1], [0], [0], [1], [0, 0, 1, 1], [], []>} : vector<32x128xbf16>, vector<128x256xbf16>, vector<32x256xf32> -> vector<32x256xf32>
    %8 = vector.extract_strided_slice %7 {offsets = [0, 0], sizes = [32, 128], strides = [1, 1]} : vector<32x256xf32> to vector<32x128xf32>
    %9 = vector.extract_strided_slice %7 {offsets = [0, 128], sizes = [32, 128], strides = [1, 1]} : vector<32x256xf32> to vector<32x128xf32>
    %c0_6 = arith.constant 0 : index
    %c0_7 = arith.constant 0 : index
    %10 = vector.load %arg4[%c0_6, %c0_7] : memref<32x128xf32, #tpu.memory_space<vmem>>, vector<32x128xf32>
    %c0_8 = arith.constant 0 : index
    %c0_9 = arith.constant 0 : index
    %11 = vector.load %arg5[%c0_8, %c0_9] : memref<32x128xf32, #tpu.memory_space<vmem>>, vector<32x128xf32>
    %12 = arith.mulf %3, %10 : vector<32x128xf32>
    %13 = arith.mulf %4, %11 : vector<32x128xf32>
    %14 = arith.addf %12, %13 : vector<32x128xf32>
    %15 = arith.mulf %8, %10 : vector<32x128xf32>
    %16 = arith.mulf %9, %11 : vector<32x128xf32>
    %17 = arith.addf %15, %16 : vector<32x128xf32>
    %18 = arith.subf %14, %17 : vector<32x128xf32>
    %19 = arith.mulf %18, %18 : vector<32x128xf32>
    %20 = tpu.iota {dimensions = array<i32: 1>} : vector<1x128xi32>
    %c64_i32 = arith.constant 64 : i32
    %21 = vector.broadcast %c64_i32 : i32 to vector<1x128xi32>
    %22 = arith.cmpi sge, %20, %21 : vector<1x128xi32>
    %c96_i32 = arith.constant 96 : i32
    %23 = vector.broadcast %c96_i32 : i32 to vector<1x128xi32>
    %24 = arith.cmpi slt, %20, %23 : vector<1x128xi32>
    %25 = arith.andi %22, %24 : vector<1x128xi1>
    %26 = arith.extui %25 : vector<1x128xi1> to vector<1x128xi32>
    %27 = arith.sitofp %26 : vector<1x128xi32> to vector<1x128xf32>
    %c96_i32_10 = arith.constant 96 : i32
    %28 = vector.broadcast %c96_i32_10 : i32 to vector<1x128xi32>
    %29 = arith.cmpi sge, %20, %28 : vector<1x128xi32>
    %30 = arith.extui %29 : vector<1x128xi1> to vector<1x128xi32>
    %31 = arith.sitofp %30 : vector<1x128xi32> to vector<1x128xf32>
    %32 = vector.broadcast %27 : vector<1x128xf32> to vector<32x128xf32>
    %33 = arith.mulf %19, %32 : vector<32x128xf32>
    %cst_11 = arith.constant dense<0.000000e+00> : vector<32xf32>
    %34 = vector.multi_reduction <add>, %33, %cst_11 [1] : vector<32x128xf32> to vector<32xf32>
    %35 = vector.shape_cast %34 : vector<32xf32> to vector<32x1xf32>
    %cst_12 = arith.constant dense<0.000000e+00> : vector<1xf32>
    %36 = vector.multi_reduction <add>, %35, %cst_12 [0] : vector<32x1xf32> to vector<1xf32>
    %37 = vector.shape_cast %36 : vector<1xf32> to vector<1x1xf32>
    %38 = vector.broadcast %31 : vector<1x128xf32> to vector<32x128xf32>
    %39 = arith.mulf %19, %38 : vector<32x128xf32>
    %cst_13 = arith.constant dense<0.000000e+00> : vector<32xf32>
    %40 = vector.multi_reduction <add>, %39, %cst_13 [1] : vector<32x128xf32> to vector<32xf32>
    %41 = vector.shape_cast %40 : vector<32xf32> to vector<32x1xf32>
    %cst_14 = arith.constant dense<0.000000e+00> : vector<1xf32>
    %42 = vector.multi_reduction <add>, %41, %cst_14 [0] : vector<32x1xf32> to vector<1xf32>
    %43 = vector.shape_cast %42 : vector<1xf32> to vector<1x1xf32>
    %44 = tpu.concatenate %37, %43 in 1 : vector<1x1xf32>, vector<1x1xf32> -> vector<1x2xf32>
    %cst_15 = arith.constant 9.765625E-4 : f32
    %45 = vector.broadcast %cst_15 : f32 to vector<1x2xf32>
    %46 = arith.mulf %44, %45 : vector<1x2xf32>
    %c0_16 = arith.constant 0 : index
    %c0_17 = arith.constant 0 : index
    %47 = vector.load %arg8[%c0_16, %c0_17] : memref<1x2xf32, #tpu.memory_space<vmem>>, vector<1x2xf32>
    tpu.vector_store %arg8[%c0_16, %c0_17], %46 {strides = array<i32>} : memref<1x2xf32, #tpu.memory_space<vmem>>, vector<1x2xf32>,
    %48 = arith.truncf %14 : vector<32x128xf32> to vector<32x128xbf16>
    %49 = vector.extract_strided_slice %48 {offsets = [0, 0], sizes = [32, 16], strides = [1, 1]} : vector<32x128xbf16> to vector<32x16xbf16>
    %50 = vector.extract_strided_slice %48 {offsets = [0, 16], sizes = [32, 16], strides = [1, 1]} : vector<32x128xbf16> to vector<32x16xbf16>
    %51 = vector.extract_strided_slice %48 {offsets = [0, 32], sizes = [32, 16], strides = [1, 1]} : vector<32x128xbf16> to vector<32x16xbf16>
    %52 = vector.extract_strided_slice %48 {offsets = [0, 48], sizes = [32, 16], strides = [1, 1]} : vector<32x128xbf16> to vector<32x16xbf16>
    %53 = vector.extract_strided_slice %48 {offsets = [0, 64], sizes = [32, 16], strides = [1, 1]} : vector<32x128xbf16> to vector<32x16xbf16>
    %54 = vector.extract_strided_slice %48 {offsets = [0, 80], sizes = [32, 16], strides = [1, 1]} : vector<32x128xbf16> to vector<32x16xbf16>
    %55 = vector.extract_strided_slice %48 {offsets = [0, 96], sizes = [32, 16], strides = [1, 1]} : vector<32x128xbf16> to vector<32x16xbf16>
    %56 = vector.extract_strided_slice %48 {offsets = [0, 112], sizes = [32, 16], strides = [1, 1]} : vector<32x128xbf16> to vector<32x16xbf16>
    %57 = vector.shape_cast %49 : vector<32x16xbf16> to vector<1x32x16xbf16>
    %58 = vector.shape_cast %50 : vector<32x16xbf16> to vector<1x32x16xbf16>
    %59 = vector.shape_cast %51 : vector<32x16xbf16> to vector<1x32x16xbf16>
    %60 = vector.shape_cast %52 : vector<32x16xbf16> to vector<1x32x16xbf16>
    %61 = tpu.concatenate %57, %58, %59, %60 in 0 : vector<1x32x16xbf16>, vector<1x32x16xbf16>, vector<1x32x16xbf16>, vector<1x32x16xbf16> -> vector<4x32x16xbf16>
    %62 = vector.shape_cast %53 : vector<32x16xbf16> to vector<1x32x16xbf16>
    %63 = vector.shape_cast %53 : vector<32x16xbf16> to vector<1x32x16xbf16>
    %64 = vector.shape_cast %54 : vector<32x16xbf16> to vector<1x32x16xbf16>
    %65 = vector.shape_cast %54 : vector<32x16xbf16> to vector<1x32x16xbf16>
    %66 = tpu.concatenate %62, %63, %64, %65 in 0 : vector<1x32x16xbf16>, vector<1x32x16xbf16>, vector<1x32x16xbf16>, vector<1x32x16xbf16> -> vector<4x32x16xbf16>
    %67 = vector.shape_cast %55 : vector<32x16xbf16> to vector<1x32x16xbf16>
    %68 = vector.shape_cast %55 : vector<32x16xbf16> to vector<1x32x16xbf16>
    %69 = vector.shape_cast %56 : vector<32x16xbf16> to vector<1x32x16xbf16>
    %70 = vector.shape_cast %56 : vector<32x16xbf16> to vector<1x32x16xbf16>
    %71 = tpu.concatenate %67, %68, %69, %70 in 0 : vector<1x32x16xbf16>, vector<1x32x16xbf16>, vector<1x32x16xbf16>, vector<1x32x16xbf16> -> vector<4x32x16xbf16>
    "tpu.trace_start"() <{level = 10 : i32, message = "hqd,hkd->hqk"}> : () -> ()
    %cst_18 = arith.constant dense<0.000000e+00> : vector<4x32x32xf32>
    %72 = tpu.matmul %61, %66, %cst_18 {dimension_numbers = #tpu.dot_dimension_numbers<[2], [2], [1], [1], [0, 0, 0, 1, 1, 1], [0], [0]>} : vector<4x32x16xbf16>, vector<4x32x16xbf16>, vector<4x32x32xf32> -> vector<4x32x32xf32>
    "tpu.trace_stop"() : () -> ()
    %cst_19 = arith.constant 2.500000e-01 : f32
    %73 = vector.broadcast %cst_19 : f32 to vector<4x32x32xf32>
    %74 = arith.mulf %72, %73 : vector<4x32x32xf32>
    %c0_20 = arith.constant 0 : index
    %c0_21 = arith.constant 0 : index
    %75 = vector.load %arg6[%c0_20, %c0_21] : memref<32x32xf32, #tpu.memory_space<vmem>>, vector<32x32xf32>
    %76 = vector.shape_cast %75 : vector<32x32xf32> to vector<1x32x32xf32>
    %77 = vector.broadcast %76 : vector<1x32x32xf32> to vector<4x32x32xf32>
    %78 = arith.addf %74, %77 : vector<4x32x32xf32>
    %cst_22 = arith.constant dense<0xFF800000> : vector<4x32xf32>
    %79 = vector.multi_reduction <maximumf>, %78, %cst_22 [2] : vector<4x32x32xf32> to vector<4x32xf32>
    %80 = vector.shape_cast %79 : vector<4x32xf32> to vector<4x32x1xf32>
    %81 = vector.broadcast %80 : vector<4x32x1xf32> to vector<4x32x32xf32>
    %82 = arith.subf %78, %81 : vector<4x32x32xf32>
    %83 = math.exp %82 : vector<4x32x32xf32>
    %cst_23 = arith.constant dense<0.000000e+00> : vector<4x32xf32>
    %84 = vector.multi_reduction <add>, %83, %cst_23 [2] : vector<4x32x32xf32> to vector<4x32xf32>
    %85 = vector.shape_cast %84 : vector<4x32xf32> to vector<4x32x1xf32>
    %86 = tpu.reciprocal %85 {approx = true} : vector<4x32x1xf32> -> vector<4x32x1xf32>
    %87 = vector.broadcast %86 : vector<4x32x1xf32> to vector<4x32x32xf32>
    %88 = arith.mulf %83, %87 : vector<4x32x32xf32>
    %c0_24 = arith.constant 0 : index
    %c0_25 = arith.constant 0 : index
    %c0_26 = arith.constant 0 : index
    %89 = vector.load %arg3[%c0_24, %c0_25, %c0_26] : memref<4x16x64xbf16, #tpu.memory_space<vmem>>, vector<4x16x64xbf16>
    "tpu.trace_start"() <{level = 10 : i32, message = "hkd,hdn->hkn"}> : () -> ()
    %cst_27 = arith.constant dense<0.000000e+00> : vector<4x32x64xf32>
    %90 = tpu.matmul %71, %89, %cst_27 {dimension_numbers = #tpu.dot_dimension_numbers<[2], [1], [1], [2], [0, 0, 0, 1, 1, 2], [0], [0]>} : vector<4x32x16xbf16>, vector<4x16x64xbf16>, vector<4x32x64xf32> -> vector<4x32x64xf32>
    "tpu.trace_stop"() : () -> ()
    %91 = arith.truncf %88 : vector<4x32x32xf32> to vector<4x32x32xbf16>
    %92 = arith.truncf %90 : vector<4x32x64xf32> to vector<4x32x64xbf16>
    "tpu.trace_start"() <{level = 10 : i32, message = "hqk,hkn->hqn"}> : () -> ()
    %cst_28 = arith.constant dense<0.000000e+00> : vector<4x32x64xf32>
    %93 = tpu.matmul %91, %92, %cst_28 {dimension_numbers = #tpu.dot_dimension_numbers<[2], [1], [1], [2], [0, 0, 0, 1, 1, 2], [0], [0]>} : vector<4x32x32xbf16>, vector<4x32x64xbf16>, vector<4x32x64xf32> -> vector<4x32x64xf32>
    "tpu.trace_stop"() : () -> ()
    %cst_29 = arith.constant dense<0.000000e+00> : vector<32x64xf32>
    %94 = vector.multi_reduction <add>, %93, %cst_29 [0] : vector<4x32x64xf32> to vector<32x64xf32>
    %c0_30 = arith.constant 0 : index
    %c0_31 = arith.constant 0 : index
    %95 = vector.load %arg7[%c0_30, %c0_31] : memref<32x64xf32, #tpu.memory_space<vmem>>, vector<32x64xf32>
    tpu.vector_store %arg7[%c0_30, %c0_31], %94 {strides = array<i32>} : memref<32x64xf32, #tpu.memory_space<vmem>>, vector<32x64xf32>,
    return
  }
}

</mosaic_0001>

<llo_original>
// kernel: forward.1
$region0: #{forward.1}
  #allocation0 [shape = 'u32[]', space=smem, size = 0x4, offset = 0x4, fixed_abs, tag = 'smem constant byte address 0x4 - core index']
  #allocation1 [shape = 'u32[144,128]{1,0:T(1,128)}', space=vmem, size = 0x12000, scoped, tag = 'internal scratch']
  %s0 = inlined_call_operand.vmem [shape: bf16[32,64], index: 0, kind: input, shape index: {}]
  %s1 = inlined_call_operand.vmem [shape: bf16[64,256], index: 1, kind: input, shape index: {}]
  %s2 = inlined_call_operand.vmem [shape: bf16[128,256], index: 2, kind: input, shape index: {}]
  %s3 = inlined_call_operand.vmem [shape: bf16[4,16,64], index: 3, kind: input, shape index: {}]
  %s4 = inlined_call_operand.vmem [shape: f32[32,128], index: 4, kind: input, shape index: {}]
  %s5 = inlined_call_operand.vmem [shape: f32[32,128], index: 5, kind: input, shape index: {}]
  %s6 = inlined_call_operand.vmem [shape: f32[32,32], index: 6, kind: input, shape index: {}]
  %s7 = inlined_call_operand.hbm [shape: f32[32,64], index: 7, kind: output, shape index: {0}]
  %s8 = inlined_call_operand.vmem [shape: f32[1,2], index: 8, kind: output, shape index: {1}]
  %9 = xla_tuple %s7, %s8
  %s10 = sld [smem:[#allocation0]]
  $region46: #{forward.1} parent=0
    _
  %s12 = ssub.s32 1, %s10
  %s13 = scalar_select 0, %s12, %s10
  $region1: #{forward.1} parent=0
    #allocation2 [shape = 'u8[16384]{0}', space=vmem, size = 0x4000, scoped, tag = 'output window, operand 0, single buffered']
    #allocation3 [shape = 's32[1]{0}', space=sflag, size = 0x4, scoped, tag = 'scoped memory for forward.1']
    %14 = vsyncpa [#allocation3], 0
    // Predicated region
    $region2: #{forward.1} parent=1 // pred_check
      _
    $region3: #{forward.1} parent=1 // pred_check_branch
      %16 = sbr.rel (0) target = $region5
    $region4: #{forward.1} parent=1 // pred_region
      _
    $region5: #{forward.1} parent=1 // pred_fallthru
      _
    // Predicated region
    $region6: #{forward.1} parent=1 // pred_check
      _
    $region7: #{forward.1} parent=1 // pred_check_branch
      %18 = sbr.rel (0) target = $region9
    $region8: #{forward.1} parent=1 // pred_region
      _
    $region9: #{forward.1} parent=1 // pred_fallthru
      _
    // Predicated region
    $region10: #{forward.1} parent=1 // pred_check
      _
    $region11: #{forward.1} parent=1 // pred_check_branch
      %20 = sbr.rel (0) target = $region13
    $region12: #{forward.1} parent=1 // pred_region
      _
    $region13: #{forward.1} parent=1 // pred_fallthru
      _
    // Predicated region
    $region14: #{forward.1} parent=1 // pred_check
      _
    $region15: #{forward.1} parent=1 // pred_check_branch
      %22 = sbr.rel (0) target = $region17
    $region16: #{forward.1} parent=1 // pred_region
      _
    $region17: #{forward.1} parent=1 // pred_fallthru
      _
    // Predicated region
    $region18: #{forward.1} parent=1 // pred_check
      _
    $region19: #{forward.1} parent=1 // pred_check_branch
      %24 = sbr.rel (0) target = $region21
    $region20: #{forward.1} parent=1 // pred_region
      _
    $region21: #{forward.1} parent=1 // pred_fallthru
      _
    // Predicated region
    $region22: #{forward.1} parent=1 // pred_check
      _
    $region23: #{forward.1} parent=1 // pred_check_branch
      %26 = sbr.rel (0) target = $region25
    $region24: #{forward.1} parent=1 // pred_region
      _
    $region25: #{forward.1} parent=1 // pred_fallthru
      _
    // Predicated region
    $region26: #{forward.1} parent=1 // pred_check
      _
    $region27: #{forward.1} parent=1 // pred_check_branch
      %28 = sbr.rel (0) target = $region29
    $region28: #{forward.1} parent=1 // pred_region
      _
    $region29: #{forward.1} parent=1 // pred_fallthru
      _
    %v30 = vld [vmem:[%s0] sm:$0xf]
    %v31 = vld [vmem:[%s0 + $0x4] sm:$0xf]
    %v32 = vld [vmem:[%s0 + $0x8] sm:$0xf]
    %v33 = vld [vmem:[%s0 + $0xc] sm:$0xf]
    %v34 = vld [vmem:[%s1] sm:$0xff]
    %v35 = vld [vmem:[%s1 + $0x8] sm:$0xff]
    %v36 = vld [vmem:[%s1 + $0x10] sm:$0xff]
    %v37 = vld [vmem:[%s1 + $0x18] sm:$0xff]
    %v38 = vld [vmem:[%s1 + $0x20] sm:$0xff]
    %v39 = vld [vmem:[%s1 + $0x28] sm:$0xff]
    %v40 = vld [vmem:[%s1 + $0x30] sm:$0xff]
    %v41 = vld [vmem:[%s1 + $0x38] sm:$0xff]
    %v46 = vunpack.c.l.b16 %v30
    %v47 = vunpack.c.l.b16 %v31
    %v48 = vunpack.c.l.b16 %v32
    %v49 = vunpack.c.l.b16 %v33
    %v50 = vpack.c.b16 %v47, %v46
    %v51 = vpack.c.b16 %v49, %v48
    %v60 = vunpack.c.l.b16 %v34
    %v61 = vunpack.c.h.b16 %v34
    %v62 = vunpack.c.l.b16 %v35
    %v63 = vunpack.c.h.b16 %v35
    %v64 = vunpack.c.l.b16 %v36
    %v65 = vunpack.c.h.b16 %v36
    %v66 = vunpack.c.l.b16 %v37
    %v67 = vunpack.c.h.b16 %v37
    %v68 = vunpack.c.l.b16 %v38
    %v69 = vunpack.c.h.b16 %v38
    %v70 = vunpack.c.l.b16 %v39
    %v71 = vunpack.c.h.b16 %v39
    %v72 = vunpack.c.l.b16 %v40
    %v73 = vunpack.c.h.b16 %v40
    %v74 = vunpack.c.l.b16 %v41
    %v75 = vunpack.c.h.b16 %v41
    %v76 = vpack.c.b16 %v62, %v60
    %v77 = vpack.c.b16 %v63, %v61
    %v78 = vpack.c.b16 %v66, %v64
    %v79 = vpack.c.b16 %v67, %v65
    %v80 = vpack.c.b16 %v70, %v68
    %v81 = vpack.c.b16 %v71, %v69
    %v82 = vpack.c.b16 %v74, %v72
    %v83 = vpack.c.b16 %v75, %v73
    %vm92 = vcmask 523264
    %v94 = vsel %vm92, %v50, 0
    %v97 = vsel %vm92, %v51, 0
    %99 = vmatprep.subr.bf16.mxu0 %v77
    %100 = vmatpush1.bf16.msra.mxu0 %v76
    %101 = vmatprep.subr.bf16.mxu0 %v79
    %102 = vmatpush1.bf16.msra.mxu0 %v78
    %103 = vmatprep.subr.bf16.mxu0 %v81
    %104 = vmatpush1.bf16.msra.mxu0 %v80
    %105 = vmatprep.subr.bf16.mxu0 %v83
    %106 = vmatpush1.bf16.msra.mxu0 %v82
    %107 = vmatprep.subr.bf16.mxu0 0
    %108 = vmatpush1.bf16.msra.mxu0 0
    %109 = vmatprep.subr.bf16.mxu0 0
    %110 = vmatpush1.bf16.msra.mxu0 0
    %111 = vmatprep.subr.bf16.mxu0 0
    %112 = vmatpush1.bf16.msra.mxu0 0
    %113 = vmatprep.subr.bf16.mxu0 0
    %114 = vmatpush1.bf16.msra.mxu0 0
    %115 = vmatprep.subr.bf16.mxu0 0
    %116 = vmatpush1.bf16.msra.mxu0 0
    %117 = vmatprep.subr.bf16.mxu0 0
    %118 = vmatpush1.bf16.msra.mxu0 0
    %119 = vmatprep.subr.bf16.mxu0 0
    %120 = vmatpush1.bf16.msra.mxu0 0
    %121 = vmatprep.subr.bf16.mxu0 0
    %122 = vmatpush1.bf16.msra.mxu0 0
    %123 = vmatprep.subr.bf16.mxu0 0
    %124 = vmatpush1.bf16.msra.mxu0 0
    %125 = vmatprep.subr.bf16.mxu0 0
    %126 = vmatpush1.bf16.msra.mxu0 0
    %127 = vmatprep.subr.bf16.mxu0 0
    %128 = vmatpush1.bf16.msra.mxu0 0
    %129 = vmatprep.subr.bf16.mxu0 0
    %130 = vmatpush1.bf16.msra.mxu0 0
    %131 = vmatprep.mubr.bf16.mxu0 0
    %132 = vmatmul.mubr.bf16.gmra.mrb[0].mxu0 %v94
    %v133 = vpop.f32.mrb[0].mxu0
    %v134 = vadd.f32 0.0, %v133
    %v135 = vpop.f32.mrb[0].mxu0
    %v136 = vadd.f32 0.0, %v135
    %v137 = vpop.f32.mrb[0].mxu0
    %v138 = vadd.f32 0.0, %v137
    %v139 = vpop.f32.mrb[0].mxu0
    %v140 = vadd.f32 0.0, %v139
    %141 = vmatprep.mubr.bf16.mxu0 0
    %142 = vmatmul.mubr.bf16.gmra.mrb[0].mxu0 %v97
    %v143 = vpop.f32.mrb[0].mxu0
    %v144 = vadd.f32 0.0, %v143
    %v145 = vpop.f32.mrb[0].mxu0
    %v146 = vadd.f32 0.0, %v145
    %v147 = vpop.f32.mrb[0].mxu0
    %v148 = vadd.f32 0.0, %v147
    %v149 = vpop.f32.mrb[0].mxu0
    %v150 = vadd.f32 0.0, %v149
    %151 = vdwg.mxu0
    %v152 = vpack.c.bf16 %v140, %v136
    %v153 = vpack.c.bf16 %v150, %v146
    %v154 = vld [vmem:[%s2] sm:$0xff]
    %v155 = vld [vmem:[%s2 + $0x8] sm:$0xff]
    %v156 = vld [vmem:[%s2 + $0x10] sm:$0xff]
    %v157 = vld [vmem:[%s2 + $0x18] sm:$0xff]
    %v158 = vld [vmem:[%s2 + $0x20] sm:$0xff]
    %v159 = vld [vmem:[%s2 + $0x28] sm:$0xff]
    %v160 = vld [vmem:[%s2 + $0x30] sm:$0xff]
    %v161 = vld [vmem:[%s2 + $0x38] sm:$0xff]
    %v162 = vld [vmem:[%s2 + $0x40] sm:$0xff]
    %v163 = vld [vmem:[%s2 + $0x48] sm:$0xff]
    %v164 = vld [vmem:[%s2 + $0x50] sm:$0xff]
    %v165 = vld [vmem:[%s2 + $0x58] sm:$0xff]
    %v166 = vld [vmem:[%s2 + $0x60] sm:$0xff]
    %v167 = vld [vmem:[%s2 + $0x68] sm:$0xff]
    %v168 = vld [vmem:[%s2 + $0x70] sm:$0xff]
    %v169 = vld [vmem:[%s2 + $0x78] sm:$0xff]
    %v186 = vunpack.c.l.b16 %v154
    %v187 = vunpack.c.h.b16 %v154
    %v188 = vunpack.c.l.b16 %v155
    %v189 = vunpack.c.h.b16 %v155
    %v190 = vunpack.c.l.b16 %v156
    %v191 = vunpack.c.h.b16 %v156
    %v192 = vunpack.c.l.b16 %v157
    %v193 = vunpack.c.h.b16 %v157
    %v194 = vunpack.c.l.b16 %v158
    %v195 = vunpack.c.h.b16 %v158
    %v196 = vunpack.c.l.b16 %v159
    %v197 = vunpack.c.h.b16 %v159
    %v198 = vunpack.c.l.b16 %v160
    %v199 = vunpack.c.h.b16 %v160
    %v200 = vunpack.c.l.b16 %v161
    %v201 = vunpack.c.h.b16 %v161
    %v202 = vunpack.c.l.b16 %v162
    %v203 = vunpack.c.h.b16 %v162
    %v204 = vunpack.c.l.b16 %v163
    %v205 = vunpack.c.h.b16 %v163
    %v206 = vunpack.c.l.b16 %v164
    %v207 = vunpack.c.h.b16 %v164
    %v208 = vunpack.c.l.b16 %v165
    %v209 = vunpack.c.h.b16 %v165
    %v210 = vunpack.c.l.b16 %v166
    %v211 = vunpack.c.h.b16 %v166
    %v212 = vunpack.c.l.b16 %v167
    %v213 = vunpack.c.h.b16 %v167
    %v214 = vunpack.c.l.b16 %v168
    %v215 = vunpack.c.h.b16 %v168
    %v216 = vunpack.c.l.b16 %v169
    %v217 = vunpack.c.h.b16 %v169
    %v218 = vpack.c.b16 %v188, %v186
    %v219 = vpack.c.b16 %v189, %v187
    %v220 = vpack.c.b16 %v192, %v190
    %v221 = vpack.c.b16 %v193, %v191
    %v222 = vpack.c.b16 %v196, %v194
    %v223 = vpack.c.b16 %v197, %v195
    %v224 = vpack.c.b16 %v200, %v198
    %v225 = vpack.c.b16 %v201, %v199
    %v226 = vpack.c.b16 %v204, %v202
    %v227 = vpack.c.b16 %v205, %v203
    %v228 = vpack.c.b16 %v208, %v206
    %v229 = vpack.c.b16 %v209, %v207
    %v230 = vpack.c.b16 %v212, %v210
    %v231 = vpack.c.b16 %v213, %v211
    %v232 = vpack.c.b16 %v216, %v214
    %v233 = vpack.c.b16 %v217, %v215
    %250 = vmatprep.subr.bf16.mxu0 %v219
    %251 = vmatpush1.bf16.msra.mxu0 %v218
    %252 = vmatprep.subr.bf16.mxu0 %v221
    %253 = vmatpush1.bf16.msra.mxu0 %v220
    %254 = vmatprep.subr.bf16.mxu0 %v223
    %255 = vmatpush1.bf16.msra.mxu0 %v222
    %256 = vmatprep.subr.bf16.mxu0 %v225
    %257 = vmatpush1.bf16.msra.mxu0 %v224
    %258 = vmatprep.subr.bf16.mxu0 %v227
    %259 = vmatpush1.bf16.msra.mxu0 %v226
    %260 = vmatprep.subr.bf16.mxu0 %v229
    %261 = vmatpush1.bf16.msra.mxu0 %v228
    %262 = vmatprep.subr.bf16.mxu0 %v231
    %263 = vmatpush1.bf16.msra.mxu0 %v230
    %264 = vmatprep.subr.bf16.mxu0 %v233
    %265 = vmatpush1.bf16.msra.mxu0 %v232
    %266 = vmatprep.subr.bf16.mxu0 0
    %267 = vmatpush1.bf16.msra.mxu0 0
    %268 = vmatprep.subr.bf16.mxu0 0
    %269 = vmatpush1.bf16.msra.mxu0 0
    %270 = vmatprep.subr.bf16.mxu0 0
    %271 = vmatpush1.bf16.msra.mxu0 0
    %272 = vmatprep.subr.bf16.mxu0 0
    %273 = vmatpush1.bf16.msra.mxu0 0
    %274 = vmatprep.subr.bf16.mxu0 0
    %275 = vmatpush1.bf16.msra.mxu0 0
    %276 = vmatprep.subr.bf16.mxu0 0
    %277 = vmatpush1.bf16.msra.mxu0 0
    %278 = vmatprep.subr.bf16.mxu0 0
    %279 = vmatpush1.bf16.msra.mxu0 0
    %280 = vmatprep.subr.bf16.mxu0 0
    %281 = vmatpush1.bf16.msra.mxu0 0
    %282 = vmatprep.mubr.bf16.mxu0 0
    %283 = vmatmul.mubr.bf16.gmra.mrb[0].mxu0 %v152
    %v284 = vpop.f32.mrb[0].mxu0
    %v285 = vadd.f32 0.0, %v284
    %v286 = vpop.f32.mrb[0].mxu0
    %v287 = vadd.f32 0.0, %v286
    %v288 = vpop.f32.mrb[0].mxu0
    %v289 = vadd.f32 0.0, %v288
    %v290 = vpop.f32.mrb[0].mxu0
    %v291 = vadd.f32 0.0, %v290
    %292 = vmatprep.mubr.bf16.mxu0 0
    %293 = vmatmul.mubr.bf16.gmra.mrb[0].mxu0 %v153
    %v294 = vpop.f32.mrb[0].mxu0
    %v295 = vadd.f32 0.0, %v294
    %v296 = vpop.f32.mrb[0].mxu0
    %v297 = vadd.f32 0.0, %v296
    %v298 = vpop.f32.mrb[0].mxu0
    %v299 = vadd.f32 0.0, %v298
    %v300 = vpop.f32.mrb[0].mxu0
    %v301 = vadd.f32 0.0, %v300
    %302 = vdwg.mxu0
    %v303 = vld [vmem:[%s4] sm:$0xff]
    %v304 = vld [vmem:[%s4 + $0x8] sm:$0xff]
    %v305 = vld [vmem:[%s4 + $0x10] sm:$0xff]
    %v306 = vld [vmem:[%s4 + $0x18] sm:$0xff]
    %v307 = vld [vmem:[%s5] sm:$0xff]
    %v308 = vld [vmem:[%s5 + $0x8] sm:$0xff]
    %v309 = vld [vmem:[%s5 + $0x10] sm:$0xff]
    %v310 = vld [vmem:[%s5 + $0x18] sm:$0xff]
    %v311 = vmul.f32 %v134, %v303
    %v312 = vmul.f32 %v138, %v304
    %v313 = vmul.f32 %v144, %v305
    %v314 = vmul.f32 %v148, %v306
    %v315 = vmul.f32 %v136, %v307
    %v316 = vmul.f32 %v140, %v308
    %v317 = vmul.f32 %v146, %v309
    %v318 = vmul.f32 %v150, %v310
    %v319 = vadd.f32 %v311, %v315
    %v320 = vadd.f32 %v312, %v316
    %v321 = vadd.f32 %v313, %v317
    %v322 = vadd.f32 %v314, %v318
    %v323 = vmul.f32 %v285, %v303
    %v324 = vmul.f32 %v289, %v304
    %v325 = vmul.f32 %v295, %v305
    %v326 = vmul.f32 %v299, %v306
    %v327 = vmul.f32 %v287, %v307
    %v328 = vmul.f32 %v291, %v308
    %v329 = vmul.f32 %v297, %v309
    %v330 = vmul.f32 %v301, %v310
    %v331 = vadd.f32 %v323, %v327
    %v332 = vadd.f32 %v324, %v328
    %v333 = vadd.f32 %v325, %v329
    %v334 = vadd.f32 %v326, %v330
    %v335 = vsub.f32 %v319, %v331
    %v336 = vsub.f32 %v320, %v332
    %v337 = vsub.f32 %v321, %v333
    %v338 = vsub.f32 %v322, %v334
    %v339 = vmul.f32 %v335, %v335
    %v340 = vmul.f32 %v336, %v336
    %v341 = vmul.f32 %v337, %v337
    %v342 = vmul.f32 %v338, %v338
    %v343 = vlaneseq
    %v344 = vand.u32 %v343, 127
    %vm345 = vcmp.ge.s32.totalorder %v344, 64
    %vm346 = vcmp.lt.s32.totalorder %v344, 96
    %vm347 = vmand %vm345, %vm346
    %v348 = vsel %vm347, 1, 0
    %v349 = vcvt.s32.f32 %v348
    %vm350 = vcmp.ge.s32.totalorder %v344, 96
    %v351 = vsel %vm350, 1, 0
    %v352 = vcvt.s32.f32 %v351
    %v353 = vmul.f32 %v339, %v349
    %v354 = vmul.f32 %v340, %v349
    %v355 = vmul.f32 %v341, %v349
    %v356 = vmul.f32 %v342, %v349
    %357 = vadd.xlane.f32.xlu0 %v353
    %v358 = vpop.xlane.xlu0 %357
    %359 = vadd.xlane.f32.xlu0 %v354
    %v360 = vpop.xlane.xlu0 %359
    %361 = vadd.xlane.f32.xlu0 %v355
    %v362 = vpop.xlane.xlu0 %361
    %363 = vadd.xlane.f32.xlu0 %v356
    %v364 = vpop.xlane.xlu0 %363
    %v365 = vadd.f32 %v358, %v360
    %v366 = vadd.f32 %v365, %v362
    %v367 = vadd.f32 %v366, %v364
    %v368 = vrot.slane %v367, 4
    %v369 = vadd.f32 %v367, %v368
    %v370 = vrot.slane %v369, 2
    %v371 = vadd.f32 %v369, %v370
    %v372 = vrot.slane %v371, 1
    %v373 = vadd.f32 %v371, %v372
    %v374 = vmul.f32 %v339, %v352
    %v375 = vmul.f32 %v340, %v352
    %v376 = vmul.f32 %v341, %v352
    %v377 = vmul.f32 %v342, %v352
    %378 = vadd.xlane.f32.xlu0 %v374
    %v379 = vpop.xlane.xlu0 %378
    %380 = vadd.xlane.f32.xlu0 %v375
    %v381 = vpop.xlane.xlu0 %380
    %382 = vadd.xlane.f32.xlu0 %v376
    %v383 = vpop.xlane.xlu0 %382
    %384 = vadd.xlane.f32.xlu0 %v377
    %v385 = vpop.xlane.xlu0 %384
    %v386 = vadd.f32 %v379, %v381
    %v387 = vadd.f32 %v386, %v383
    %v388 = vadd.f32 %v387, %v385
    %v389 = vrot.slane %v388, 4
    %v390 = vadd.f32 %v388, %v389
    %v391 = vrot.slane %v390, 2
    %v392 = vadd.f32 %v390, %v391
    %v393 = vrot.slane %v392, 1
    %v394 = vadd.f32 %v392, %v393
    %vm395 = vcmask 7168
    %v396 = vsel %vm395, %v373, %v394
    %v397 = vmul.f32 %v396, 0.0009765625
    %vm398 = vcmask 8192
    %399 = vst.msk [vmem:[%s8] sm:$0x1] %vm398, %v397
    %v400 = vpack.c.bf16 %v320, %v319
    %v401 = vpack.c.bf16 %v322, %v321
    %404 = vrot.lane.b32.xlu0 %v400, 112
    %v405 = vpop.permute.xlu0 %404
    %406 = vrot.lane.b32.xlu0 %v401, 112
    %v407 = vpop.permute.xlu0 %406
    %408 = vrot.lane.b32.xlu0 %v400, 96
    %v409 = vpop.permute.xlu0 %408
    %410 = vrot.lane.b32.xlu0 %v401, 96
    %v411 = vpop.permute.xlu0 %410
    %412 = vrot.lane.b32.xlu0 %v400, 80
    %v413 = vpop.permute.xlu0 %412
    %414 = vrot.lane.b32.xlu0 %v401, 80
    %v415 = vpop.permute.xlu0 %414
    %416 = vrot.lane.b32.xlu0 %v400, 64
    %v417 = vpop.permute.xlu0 %416
    %418 = vrot.lane.b32.xlu0 %v401, 64
    %v419 = vpop.permute.xlu0 %418
    %vm420 = vcmask 130048
    %v422 = vsel %vm420, %v400, 0
    %v425 = vsel %vm420, %v401, 0
    %v428 = vsel %vm420, %v417, 0
    %v431 = vsel %vm420, %v419, 0
    %433 = vmatprep.subr.bf16.mxu0 0
    %434 = vmatpush1.bf16.xpose.msra.mxu0 %v428
    %435 = vmatprep.subr.bf16.mxu0 0
    %436 = vmatpush1.bf16.xpose.msra.mxu0 %v431
    %437 = vmatprep.subr.bf16.mxu0 0
    %438 = vmatpush1.bf16.xpose.msra.mxu0 0
    %439 = vmatprep.subr.bf16.mxu0 0
    %440 = vmatpush1.bf16.xpose.msra.mxu0 0
    %441 = vmatprep.subr.bf16.mxu0 0
    %442 = vmatpush1.bf16.xpose.msra.mxu0 0
    %443 = vmatprep.subr.bf16.mxu0 0
    %444 = vmatpush1.bf16.xpose.msra.mxu0 0
    %445 = vmatprep.subr.bf16.mxu0 0
    %446 = vmatpush1.bf16.xpose.msra.mxu0 0
    %447 = vmatprep.subr.bf16.mxu0 0
    %448 = vmatpush1.bf16.xpose.msra.mxu0 0
    %449 = vmatprep.subr.bf16.mxu0 0
    %450 = vmatpush1.bf16.xpose.msra.mxu0 0
    %451 = vmatprep.subr.bf16.mxu0 0
    %452 = vmatpush1.bf16.xpose.msra.mxu0 0
    %453 = vmatprep.subr.bf16.mxu0 0
    %454 = vmatpush1.bf16.xpose.msra.mxu0 0
    %455 = vmatprep.subr.bf16.mxu0 0
    %456 = vmatpush1.bf16.xpose.msra.mxu0 0
    %457 = vmatprep.subr.bf16.mxu0 0
    %458 = vmatpush1.bf16.xpose.msra.mxu0 0
    %459 = vmatprep.subr.bf16.mxu0 0
    %460 = vmatpush1.bf16.xpose.msra.mxu0 0
    %461 = vmatprep.subr.bf16.mxu0 0
    %462 = vmatpush1.bf16.xpose.msra.mxu0 0
    %463 = vmatprep.subr.bf16.mxu0 0
    %464 = vmatpush1.bf16.xpose.msra.mxu0 0
    %465 = vmatprep.mubr.bf16.mxu0 0
    %466 = vmatmul.mubr.bf16.gmra.mrb[0].mxu0 %v422
    %v467 = vpop.f32.mrb[0].mxu0
    %v468 = vadd.f32 0.0, %v467
    %v469 = vpop.f32.mrb[0].mxu0
    %v470 = vpop.f32.mrb[0].mxu0
    %v471 = vadd.f32 0.0, %v470
    %v472 = vpop.f32.mrb[0].mxu0
    %473 = vmatprep.mubr.bf16.mxu0 0
    %474 = vmatmul.mubr.bf16.gmra.mrb[0].mxu0 %v425
    %v475 = vpop.f32.mrb[0].mxu0
    %v476 = vadd.f32 0.0, %v475
    %v477 = vpop.f32.mrb[0].mxu0
    %v478 = vpop.f32.mrb[0].mxu0
    %v479 = vadd.f32 0.0, %v478
    %v480 = vpop.f32.mrb[0].mxu0
    %481 = vdwg.mxu0
    %v483 = vsel %vm420, %v405, 0
    %v486 = vsel %vm420, %v407, 0
    %488 = vmatprep.subr.bf16.mxu0 0
    %489 = vmatpush1.bf16.xpose.msra.mxu0 %v428
    %490 = vmatprep.subr.bf16.mxu0 0
    %491 = vmatpush1.bf16.xpose.msra.mxu0 %v431
    %492 = vmatprep.subr.bf16.mxu0 0
    %493 = vmatpush1.bf16.xpose.msra.mxu0 0
    %494 = vmatprep.subr.bf16.mxu0 0
    %495 = vmatpush1.bf16.xpose.msra.mxu0 0
    %496 = vmatprep.subr.bf16.mxu0 0
    %497 = vmatpush1.bf16.xpose.msra.mxu0 0
    %498 = vmatprep.subr.bf16.mxu0 0
    %499 = vmatpush1.bf16.xpose.msra.mxu0 0
    %500 = vmatprep.subr.bf16.mxu0 0
    %501 = vmatpush1.bf16.xpose.msra.mxu0 0
    %502 = vmatprep.subr.bf16.mxu0 0
    %503 = vmatpush1.bf16.xpose.msra.mxu0 0
    %504 = vmatprep.subr.bf16.mxu0 0
    %505 = vmatpush1.bf16.xpose.msra.mxu0 0
    %506 = vmatprep.subr.bf16.mxu0 0
    %507 = vmatpush1.bf16.xpose.msra.mxu0 0
    %508 = vmatprep.subr.bf16.mxu0 0
    %509 = vmatpush1.bf16.xpose.msra.mxu0 0
    %510 = vmatprep.subr.bf16.mxu0 0
    %511 = vmatpush1.bf16.xpose.msra.mxu0 0
    %512 = vmatprep.subr.bf16.mxu0 0
    %513 = vmatpush1.bf16.xpose.msra.mxu0 0
    %514 = vmatprep.subr.bf16.mxu0 0
    %515 = vmatpush1.bf16.xpose.msra.mxu0 0
    %516 = vmatprep.subr.bf16.mxu0 0
    %517 = vmatpush1.bf16.xpose.msra.mxu0 0
    %518 = vmatprep.subr.bf16.mxu0 0
    %519 = vmatpush1.bf16.xpose.msra.mxu0 0
    %520 = vmatprep.mubr.bf16.mxu0 0
    %521 = vmatmul.mubr.bf16.gmra.mrb[0].mxu0 %v483
    %v522 = vpop.f32.mrb[0].mxu0
    %v523 = vadd.f32 0.0, %v522
    %v524 = vpop.f32.mrb[0].mxu0
    %v525 = vpop.f32.mrb[0].mxu0
    %v526 = vadd.f32 0.0, %v525
    %v527 = vpop.f32.mrb[0].mxu0
    %528 = vmatprep.mubr.bf16.mxu0 0
    %529 = vmatmul.mubr.bf16.gmra.mrb[0].mxu0 %v486
    %v530 = vpop.f32.mrb[0].mxu0
    %v531 = vadd.f32 0.0, %v530
    %v532 = vpop.f32.mrb[0].mxu0
    %v533 = vpop.f32.mrb[0].mxu0
    %v534 = vadd.f32 0.0, %v533
    %v535 = vpop.f32.mrb[0].mxu0
    %536 = vdwg.mxu0
    %537 = vrot.lane.b32.xlu0 %v405, 64
    %v538 = vpop.permute.xlu0 %537
    %539 = vrot.lane.b32.xlu0 %v407, 64
    %v540 = vpop.permute.xlu0 %539
    %v542 = vsel %vm420, %v409, 0
    %v545 = vsel %vm420, %v411, 0
    %v548 = vsel %vm420, %v538, 0
    %v551 = vsel %vm420, %v540, 0
    %553 = vmatprep.subr.bf16.mxu0 0
    %554 = vmatpush1.bf16.xpose.msra.mxu0 %v548
    %555 = vmatprep.subr.bf16.mxu0 0
    %556 = vmatpush1.bf16.xpose.msra.mxu0 %v551
    %557 = vmatprep.subr.bf16.mxu0 0
    %558 = vmatpush1.bf16.xpose.msra.mxu0 0
    %559 = vmatprep.subr.bf16.mxu0 0
    %560 = vmatpush1.bf16.xpose.msra.mxu0 0
    %561 = vmatprep.subr.bf16.mxu0 0
    %562 = vmatpush1.bf16.xpose.msra.mxu0 0
    %563 = vmatprep.subr.bf16.mxu0 0
    %564 = vmatpush1.bf16.xpose.msra.mxu0 0
    %565 = vmatprep.subr.bf16.mxu0 0
    %566 = vmatpush1.bf16.xpose.msra.mxu0 0
    %567 = vmatprep.subr.bf16.mxu0 0
    %568 = vmatpush1.bf16.xpose.msra.mxu0 0
    %569 = vmatprep.subr.bf16.mxu0 0
    %570 = vmatpush1.bf16.xpose.msra.mxu0 0
    %571 = vmatprep.subr.bf16.mxu0 0
    %572 = vmatpush1.bf16.xpose.msra.mxu0 0
    %573 = vmatprep.subr.bf16.mxu0 0
    %574 = vmatpush1.bf16.xpose.msra.mxu0 0
    %575 = vmatprep.subr.bf16.mxu0 0
    %576 = vmatpush1.bf16.xpose.msra.mxu0 0
    %577 = vmatprep.subr.bf16.mxu0 0
    %578 = vmatpush1.bf16.xpose.msra.mxu0 0
    %579 = vmatprep.subr.bf16.mxu0 0
    %580 = vmatpush1.bf16.xpose.msra.mxu0 0
    %581 = vmatprep.subr.bf16.mxu0 0
    %582 = vmatpush1.bf16.xpose.msra.mxu0 0
    %583 = vmatprep.subr.bf16.mxu0 0
    %584 = vmatpush1.bf16.xpose.msra.mxu0 0
    %585 = vmatprep.mubr.bf16.mxu0 0
    %586 = vmatmul.mubr.bf16.gmra.mrb[0].mxu0 %v542
    %v587 = vpop.f32.mrb[0].mxu0
    %v588 = vadd.f32 0.0, %v587
    %v589 = vpop.f32.mrb[0].mxu0
    %v590 = vpop.f32.mrb[0].mxu0
    %v591 = vadd.f32 0.0, %v590
    %v592 = vpop.f32.mrb[0].mxu0
    %593 = vmatprep.mubr.bf16.mxu0 0
    %594 = vmatmul.mubr.bf16.gmra.mrb[0].mxu0 %v545
    %v595 = vpop.f32.mrb[0].mxu0
    %v596 = vadd.f32 0.0, %v595
    %v597 = vpop.f32.mrb[0].mxu0
    %v598 = vpop.f32.mrb[0].mxu0
    %v599 = vadd.f32 0.0, %v598
    %v600 = vpop.f32.mrb[0].mxu0
    %601 = vdwg.mxu0
    %v603 = vsel %vm420, %v413, 0
    %v606 = vsel %vm420, %v415, 0
    %608 = vmatprep.subr.bf16.mxu0 0
    %609 = vmatpush1.bf16.xpose.msra.mxu0 %v548
    %610 = vmatprep.subr.bf16.mxu0 0
    %611 = vmatpush1.bf16.xpose.msra.mxu0 %v551
    %612 = vmatprep.subr.bf16.mxu0 0
    %613 = vmatpush1.bf16.xpose.msra.mxu0 0
    %614 = vmatprep.subr.bf16.mxu0 0
    %615 = vmatpush1.bf16.xpose.msra.mxu0 0
    %616 = vmatprep.subr.bf16.mxu0 0
    %617 = vmatpush1.bf16.xpose.msra.mxu0 0
    %618 = vmatprep.subr.bf16.mxu0 0
    %619 = vmatpush1.bf16.xpose.msra.mxu0 0
    %620 = vmatprep.subr.bf16.mxu0 0
    %621 = vmatpush1.bf16.xpose.msra.mxu0 0
    %622 = vmatprep.subr.bf16.mxu0 0
    %623 = vmatpush1.bf16.xpose.msra.mxu0 0
    %624 = vmatprep.subr.bf16.mxu0 0
    %625 = vmatpush1.bf16.xpose.msra.mxu0 0
    %626 = vmatprep.subr.bf16.mxu0 0
    %627 = vmatpush1.bf16.xpose.msra.mxu0 0
    %628 = vmatprep.subr.bf16.mxu0 0
    %629 = vmatpush1.bf16.xpose.msra.mxu0 0
    %630 = vmatprep.subr.bf16.mxu0 0
    %631 = vmatpush1.bf16.xpose.msra.mxu0 0
    %632 = vmatprep.subr.bf16.mxu0 0
    %633 = vmatpush1.bf16.xpose.msra.mxu0 0
    %634 = vmatprep.subr.bf16.mxu0 0
    %635 = vmatpush1.bf16.xpose.msra.mxu0 0
    %636 = vmatprep.subr.bf16.mxu0 0
    %637 = vmatpush1.bf16.xpose.msra.mxu0 0
    %638 = vmatprep.subr.bf16.mxu0 0
    %639 = vmatpush1.bf16.xpose.msra.mxu0 0
    %640 = vmatprep.mubr.bf16.mxu0 0
    %641 = vmatmul.mubr.bf16.gmra.mrb[0].mxu0 %v603
    %v642 = vpop.f32.mrb[0].mxu0
    %v643 = vadd.f32 0.0, %v642
    %v644 = vpop.f32.mrb[0].mxu0
    %v645 = vpop.f32.mrb[0].mxu0
    %v646 = vadd.f32 0.0, %v645
    %v647 = vpop.f32.mrb[0].mxu0
    %648 = vmatprep.mubr.bf16.mxu0 0
    %649 = vmatmul.mubr.bf16.gmra.mrb[0].mxu0 %v606
    %v650 = vpop.f32.mrb[0].mxu0
    %v651 = vadd.f32 0.0, %v650
    %v652 = vpop.f32.mrb[0].mxu0
    %v653 = vpop.f32.mrb[0].mxu0
    %v654 = vadd.f32 0.0, %v653
    %v655 = vpop.f32.mrb[0].mxu0
    %656 = vdwg.mxu0
    %v657 = vmul.f32 %v468, 0.25
    %v658 = vmul.f32 %v471, 0.25
    %v659 = vmul.f32 %v476, 0.25
    %v660 = vmul.f32 %v479, 0.25
    %v661 = vmul.f32 %v523, 0.25
    %v662 = vmul.f32 %v526, 0.25
    %v663 = vmul.f32 %v531, 0.25
    %v664 = vmul.f32 %v534, 0.25
    %v665 = vmul.f32 %v588, 0.25
    %v666 = vmul.f32 %v591, 0.25
    %v667 = vmul.f32 %v596, 0.25
    %v668 = vmul.f32 %v599, 0.25
    %v669 = vmul.f32 %v643, 0.25
    %v670 = vmul.f32 %v646, 0.25
    %v671 = vmul.f32 %v651, 0.25
    %v672 = vmul.f32 %v654, 0.25
    %v673 = vld [vmem:[%s6] sm:$0xff]
    %v674 = vld [vmem:[%s6 + $0x8] sm:$0xff]
    %v675 = vld [vmem:[%s6 + $0x10] sm:$0xff]
    %v676 = vld [vmem:[%s6 + $0x18] sm:$0xff]
    %v677 = vadd.f32 %v657, %v673
    %v678 = vadd.f32 %v658, %v674
    %v679 = vadd.f32 %v659, %v675
    %v680 = vadd.f32 %v660, %v676
    %v681 = vadd.f32 %v661, %v673
    %v682 = vadd.f32 %v662, %v674
    %v683 = vadd.f32 %v663, %v675
    %v684 = vadd.f32 %v664, %v676
    %v685 = vadd.f32 %v665, %v673
    %v686 = vadd.f32 %v666, %v674
    %v687 = vadd.f32 %v667, %v675
    %v688 = vadd.f32 %v668, %v676
    %v689 = vadd.f32 %v669, %v673
    %v690 = vadd.f32 %v670, %v674
    %v691 = vadd.f32 %v671, %v675
    %v692 = vadd.f32 %v672, %v676
    %vm693 = vcmask 261120
    %v694 = vsel %vm693, %v677, -inf
    %695 = vmax.xlane.f32.xlu0 %v694
    %v696 = vpop.xlane.xlu0 %695
    %v697 = vsel %vm693, %v678, -inf
    %698 = vmax.xlane.f32.xlu0 %v697
    %v699 = vpop.xlane.xlu0 %698
    %v700 = vsel %vm693, %v679, -inf
    %701 = vmax.xlane.f32.xlu0 %v700
    %v702 = vpop.xlane.xlu0 %701
    %v703 = vsel %vm693, %v680, -inf
    %704 = vmax.xlane.f32.xlu0 %v703
    %v705 = vpop.xlane.xlu0 %704
    %v706 = vsel %vm693, %v681, -inf
    %707 = vmax.xlane.f32.xlu0 %v706
    %v708 = vpop.xlane.xlu0 %707
    %v709 = vsel %vm693, %v682, -inf
    %710 = vmax.xlane.f32.xlu0 %v709
    %v711 = vpop.xlane.xlu0 %710
    %v712 = vsel %vm693, %v683, -inf
    %713 = vmax.xlane.f32.xlu0 %v712
    %v714 = vpop.xlane.xlu0 %713
    %v715 = vsel %vm693, %v684, -inf
    %716 = vmax.xlane.f32.xlu0 %v715
    %v717 = vpop.xlane.xlu0 %716
    %v718 = vsel %vm693, %v685, -inf
    %719 = vmax.xlane.f32.xlu0 %v718
    %v720 = vpop.xlane.xlu0 %719
    %v721 = vsel %vm693, %v686, -inf
    %722 = vmax.xlane.f32.xlu0 %v721
    %v723 = vpop.xlane.xlu0 %722
    %v724 = vsel %vm693, %v687, -inf
    %725 = vmax.xlane.f32.xlu0 %v724
    %v726 = vpop.xlane.xlu0 %725
    %v727 = vsel %vm693, %v688, -inf
    %728 = vmax.xlane.f32.xlu0 %v727
    %v729 = vpop.xlane.xlu0 %728
    %v730 = vsel %vm693, %v689, -inf
    %731 = vmax.xlane.f32.xlu0 %v730
    %v732 = vpop.xlane.xlu0 %731
    %v733 = vsel %vm693, %v690, -inf
    %734 = vmax.xlane.f32.xlu0 %v733
    %v735 = vpop.xlane.xlu0 %734
    %v736 = vsel %vm693, %v691, -inf
    %737 = vmax.xlane.f32.xlu0 %v736
    %v738 = vpop.xlane.xlu0 %737
    %v739 = vsel %vm693, %v692, -inf
    %740 = vmax.xlane.f32.xlu0 %v739
    %v741 = vpop.xlane.xlu0 %740
    %v742 = vsub.f32 %v677, %v696
    %v743 = vsub.f32 %v678, %v699
    %v744 = vsub.f32 %v679, %v702
    %v745 = vsub.f32 %v680, %v705
    %v746 = vsub.f32 %v681, %v708
    %v747 = vsub.f32 %v682, %v711
    %v748 = vsub.f32 %v683, %v714
    %v749 = vsub.f32 %v684, %v717
    %v750 = vsub.f32 %v685, %v720
    %v751 = vsub.f32 %v686, %v723
    %v752 = vsub.f32 %v687, %v726
    %v753 = vsub.f32 %v688, %v729
    %v754 = vsub.f32 %v689, %v732
    %v755 = vsub.f32 %v690, %v735
    %v756 = vsub.f32 %v691, %v738
    %v757 = vsub.f32 %v692, %v741
    %v758 = vmul.f32 %v742, 1.442695
    %v759 = vpow.pop %v758
    %v760 = vmul.f32 %v743, 1.442695
    %v761 = vpow.pop %v760
    %v762 = vmul.f32 %v744, 1.442695
    %v763 = vpow.pop %v762
    %v764 = vmul.f32 %v745, 1.442695
    %v765 = vpow.pop %v764
    %v766 = vmul.f32 %v746, 1.442695
    %v767 = vpow.pop %v766
    %v768 = vmul.f32 %v747, 1.442695
    %v769 = vpow.pop %v768
    %v770 = vmul.f32 %v748, 1.442695
    %v771 = vpow.pop %v770
    %v772 = vmul.f32 %v749, 1.442695
    %v773 = vpow.pop %v772
    %v774 = vmul.f32 %v750, 1.442695
    %v775 = vpow.pop %v774
    %v776 = vmul.f32 %v751, 1.442695
    %v777 = vpow.pop %v776
    %v778 = vmul.f32 %v752, 1.442695
    %v779 = vpow.pop %v778
    %v780 = vmul.f32 %v753, 1.442695
    %v781 = vpow.pop %v780
    %v782 = vmul.f32 %v754, 1.442695
    %v783 = vpow.pop %v782
    %v784 = vmul.f32 %v755, 1.442695
    %v785 = vpow.pop %v784
    %v786 = vmul.f32 %v756, 1.442695
    %v787 = vpow.pop %v786
    %v788 = vmul.f32 %v757, 1.442695
    %v789 = vpow.pop %v788
    %v790 = vsel %vm693, %v759, 0.0
    %791 = vadd.xlane.f32.xlu0 %v790
    %v792 = vpop.xlane.xlu0 %791
    %v793 = vsel %vm693, %v761, 0.0
    %794 = vadd.xlane.f32.xlu0 %v793
    %v795 = vpop.xlane.xlu0 %794
    %v796 = vsel %vm693, %v763, 0.0
    %797 = vadd.xlane.f32.xlu0 %v796
    %v798 = vpop.xlane.xlu0 %797
    %v799 = vsel %vm693, %v765, 0.0
    %800 = vadd.xlane.f32.xlu0 %v799
    %v801 = vpop.xlane.xlu0 %800
    %v802 = vsel %vm693, %v767, 0.0
    %803 = vadd.xlane.f32.xlu0 %v802
    %v804 = vpop.xlane.xlu0 %803
    %v805 = vsel %vm693, %v769, 0.0
    %806 = vadd.xlane.f32.xlu0 %v805
    %v807 = vpop.xlane.xlu0 %806
    %v808 = vsel %vm693, %v771, 0.0
    %809 = vadd.xlane.f32.xlu0 %v808
    %v810 = vpop.xlane.xlu0 %809
    %v811 = vsel %vm693, %v773, 0.0
    %812 = vadd.xlane.f32.xlu0 %v811
    %v813 = vpop.xlane.xlu0 %812
    %v814 = vsel %vm693, %v775, 0.0
    %815 = vadd.xlane.f32.xlu0 %v814
    %v816 = vpop.xlane.xlu0 %815
    %v817 = vsel %vm693, %v777, 0.0
    %818 = vadd.xlane.f32.xlu0 %v817
    %v819 = vpop.xlane.xlu0 %818
    %v820 = vsel %vm693, %v779, 0.0
    %821 = vadd.xlane.f32.xlu0 %v820
    %v822 = vpop.xlane.xlu0 %821
    %v823 = vsel %vm693, %v781, 0.0
    %824 = vadd.xlane.f32.xlu0 %v823
    %v825 = vpop.xlane.xlu0 %824
    %v826 = vsel %vm693, %v783, 0.0
    %827 = vadd.xlane.f32.xlu0 %v826
    %v828 = vpop.xlane.xlu0 %827
    %v829 = vsel %vm693, %v785, 0.0
    %830 = vadd.xlane.f32.xlu0 %v829
    %v831 = vpop.xlane.xlu0 %830
    %v832 = vsel %vm693, %v787, 0.0
    %833 = vadd.xlane.f32.xlu0 %v832
    %v834 = vpop.xlane.xlu0 %833
    %v835 = vsel %vm693, %v789, 0.0
    %836 = vadd.xlane.f32.xlu0 %v835
    %v837 = vpop.xlane.xlu0 %836
    %v838 = vrcp.pop %v792
    %v839 = vrcp.pop %v795
    %v840 = vrcp.pop %v798
    %v841 = vrcp.pop %v801
    %v842 = vrcp.pop %v804
    %v843 = vrcp.pop %v807
    %v844 = vrcp.pop %v810
    %v845 = vrcp.pop %v813
    %v846 = vrcp.pop %v816
    %v847 = vrcp.pop %v819
    %v848 = vrcp.pop %v822
    %v849 = vrcp.pop %v825
    %v850 = vrcp.pop %v828
    %v851 = vrcp.pop %v831
    %v852 = vrcp.pop %v834
    %v853 = vrcp.pop %v837
    %v854 = vmul.f32 %v759, %v838
    %v855 = vmul.f32 %v761, %v839
    %v856 = vmul.f32 %v763, %v840
    %v857 = vmul.f32 %v765, %v841
    %v858 = vmul.f32 %v767, %v842
    %v859 = vmul.f32 %v769, %v843
    %v860 = vmul.f32 %v771, %v844
    %v861 = vmul.f32 %v773, %v845
    %v862 = vmul.f32 %v775, %v846
    %v863 = vmul.f32 %v777, %v847
    %v864 = vmul.f32 %v779, %v848
    %v865 = vmul.f32 %v781, %v849
    %v866 = vmul.f32 %v783, %v850
    %v867 = vmul.f32 %v785, %v851
    %v868 = vmul.f32 %v787, %v852
    %v869 = vmul.f32 %v789, %v853
    %v870 = vld [vmem:[%s3] sm:$0xf]
    %v871 = vld [vmem:[%s3 + $0x4] sm:$0xf]
    %v872 = vld [vmem:[%s3 + $0x8] sm:$0xf]
    %v873 = vld [vmem:[%s3 + $0xc] sm:$0xf]
    %v874 = vld [vmem:[%s3 + $0x10] sm:$0xf]
    %v875 = vld [vmem:[%s3 + $0x14] sm:$0xf]
    %v876 = vld [vmem:[%s3 + $0x18] sm:$0xf]
    %v877 = vld [vmem:[%s3 + $0x1c] sm:$0xf]
    %878 = vrot.lane.b32.xlu0 %v400, 32
    %v879 = vpop.permute.xlu0 %878
    %880 = vrot.lane.b32.xlu0 %v401, 32
    %v881 = vpop.permute.xlu0 %880
    %v884 = vunpack.c.l.b16 %v870
    %v885 = vunpack.c.l.b16 %v871
    %v886 = vpack.c.b16 %v885, %v884
    %v889 = vsel %vm420, %v879, 0
    %v892 = vsel %vm420, %v881, 0
    %894 = vmatprep.subr.bf16.mxu0 0
    %895 = vmatpush1.bf16.msra.mxu0 %v886
    %896 = vmatprep.subr.bf16.mxu0 0
    %897 = vmatpush1.bf16.msra.mxu0 0
    %898 = vmatprep.subr.bf16.mxu0 0
    %899 = vmatpush1.bf16.msra.mxu0 0
    %900 = vmatprep.subr.bf16.mxu0 0
    %901 = vmatpush1.bf16.msra.mxu0 0
    %902 = vmatprep.subr.bf16.mxu0 0
    %903 = vmatpush1.bf16.msra.mxu0 0
    %904 = vmatprep.subr.bf16.mxu0 0
    %905 = vmatpush1.bf16.msra.mxu0 0
    %906 = vmatprep.subr.bf16.mxu0 0
    %907 = vmatpush1.bf16.msra.mxu0 0
    %908 = vmatprep.subr.bf16.mxu0 0
    %909 = vmatpush1.bf16.msra.mxu0 0
    %910 = vmatprep.subr.bf16.mxu0 0
    %911 = vmatpush1.bf16.msra.mxu0 0
    %912 = vmatprep.subr.bf16.mxu0 0
    %913 = vmatpush1.bf16.msra.mxu0 0
    %914 = vmatprep.subr.bf16.mxu0 0
    %915 = vmatpush1.bf16.msra.mxu0 0
    %916 = vmatprep.subr.bf16.mxu0 0
    %917 = vmatpush1.bf16.msra.mxu0 0
    %918 = vmatprep.subr.bf16.mxu0 0
    %919 = vmatpush1.bf16.msra.mxu0 0
    %920 = vmatprep.subr.bf16.mxu0 0
    %921 = vmatpush1.bf16.msra.mxu0 0
    %922 = vmatprep.subr.bf16.mxu0 0
    %923 = vmatpush1.bf16.msra.mxu0 0
    %924 = vmatprep.subr.bf16.mxu0 0
    %925 = vmatpush1.bf16.msra.mxu0 0
    %926 = vmatprep.mubr.bf16.mxu0 0
    %927 = vmatmul.mubr.bf16.gmra.mrb[0].mxu0 %v889
    %v928 = vpop.f32.mrb[0].mxu0
    %v929 = vadd.f32 0.0, %v928
    %v930 = vpop.f32.mrb[0].mxu0
    %v931 = vpop.f32.mrb[0].mxu0
    %v932 = vadd.f32 0.0, %v931
    %v933 = vpop.f32.mrb[0].mxu0
    %934 = vmatprep.mubr.bf16.mxu0 0
    %935 = vmatmul.mubr.bf16.gmra.mrb[0].mxu0 %v892
    %v936 = vpop.f32.mrb[0].mxu0
    %v937 = vadd.f32 0.0, %v936
    %v938 = vpop.f32.mrb[0].mxu0
    %v939 = vpop.f32.mrb[0].mxu0
    %v940 = vadd.f32 0.0, %v939
    %v941 = vpop.f32.mrb[0].mxu0
    %942 = vdwg.mxu0
    %v945 = vunpack.c.l.b16 %v872
    %v946 = vunpack.c.l.b16 %v873
    %v947 = vpack.c.b16 %v946, %v945
    %949 = vmatprep.subr.bf16.mxu0 0
    %950 = vmatpush1.bf16.msra.mxu0 %v947
    %951 = vmatprep.subr.bf16.mxu0 0
    %952 = vmatpush1.bf16.msra.mxu0 0
    %953 = vmatprep.subr.bf16.mxu0 0
    %954 = vmatpush1.bf16.msra.mxu0 0
    %955 = vmatprep.subr.bf16.mxu0 0
    %956 = vmatpush1.bf16.msra.mxu0 0
    %957 = vmatprep.subr.bf16.mxu0 0
    %958 = vmatpush1.bf16.msra.mxu0 0
    %959 = vmatprep.subr.bf16.mxu0 0
    %960 = vmatpush1.bf16.msra.mxu0 0
    %961 = vmatprep.subr.bf16.mxu0 0
    %962 = vmatpush1.bf16.msra.mxu0 0
    %963 = vmatprep.subr.bf16.mxu0 0
    %964 = vmatpush1.bf16.msra.mxu0 0
    %965 = vmatprep.subr.bf16.mxu0 0
    %966 = vmatpush1.bf16.msra.mxu0 0
    %967 = vmatprep.subr.bf16.mxu0 0
    %968 = vmatpush1.bf16.msra.mxu0 0
    %969 = vmatprep.subr.bf16.mxu0 0
    %970 = vmatpush1.bf16.msra.mxu0 0
    %971 = vmatprep.subr.bf16.mxu0 0
    %972 = vmatpush1.bf16.msra.mxu0 0
    %973 = vmatprep.subr.bf16.mxu0 0
    %974 = vmatpush1.bf16.msra.mxu0 0
    %975 = vmatprep.subr.bf16.mxu0 0
    %976 = vmatpush1.bf16.msra.mxu0 0
    %977 = vmatprep.subr.bf16.mxu0 0
    %978 = vmatpush1.bf16.msra.mxu0 0
    %979 = vmatprep.subr.bf16.mxu0 0
    %980 = vmatpush1.bf16.msra.mxu0 0
    %981 = vmatprep.mubr.bf16.mxu0 0
    %982 = vmatmul.mubr.bf16.gmra.mrb[0].mxu0 %v889
    %v983 = vpop.f32.mrb[0].mxu0
    %v984 = vadd.f32 0.0, %v983
    %v985 = vpop.f32.mrb[0].mxu0
    %v986 = vpop.f32.mrb[0].mxu0
    %v987 = vadd.f32 0.0, %v986
    %v988 = vpop.f32.mrb[0].mxu0
    %989 = vmatprep.mubr.bf16.mxu0 0
    %990 = vmatmul.mubr.bf16.gmra.mrb[0].mxu0 %v892
    %v991 = vpop.f32.mrb[0].mxu0
    %v992 = vadd.f32 0.0, %v991
    %v993 = vpop.f32.mrb[0].mxu0
    %v994 = vpop.f32.mrb[0].mxu0
    %v995 = vadd.f32 0.0, %v994
    %v996 = vpop.f32.mrb[0].mxu0
    %997 = vdwg.mxu0
    %998 = vrot.lane.b32.xlu0 %v405, 32
    %v999 = vpop.permute.xlu0 %998
    %1000 = vrot.lane.b32.xlu0 %v407, 32
    %v1001 = vpop.permute.xlu0 %1000
    %v1004 = vunpack.c.l.b16 %v874
    %v1005 = vunpack.c.l.b16 %v875
    %v1006 = vpack.c.b16 %v1005, %v1004
    %v1009 = vsel %vm420, %v999, 0
    %v1012 = vsel %vm420, %v1001, 0
    %1014 = vmatprep.subr.bf16.mxu0 0
    %1015 = vmatpush1.bf16.msra.mxu0 %v1006
    %1016 = vmatprep.subr.bf16.mxu0 0
    %1017 = vmatpush1.bf16.msra.mxu0 0
    %1018 = vmatprep.subr.bf16.mxu0 0
    %1019 = vmatpush1.bf16.msra.mxu0 0
    %1020 = vmatprep.subr.bf16.mxu0 0
    %1021 = vmatpush1.bf16.msra.mxu0 0
    %1022 = vmatprep.subr.bf16.mxu0 0
    %1023 = vmatpush1.bf16.msra.mxu0 0
    %1024 = vmatprep.subr.bf16.mxu0 0
    %1025 = vmatpush1.bf16.msra.mxu0 0
    %1026 = vmatprep.subr.bf16.mxu0 0
    %1027 = vmatpush1.bf16.msra.mxu0 0
    %1028 = vmatprep.subr.bf16.mxu0 0
    %1029 = vmatpush1.bf16.msra.mxu0 0
    %1030 = vmatprep.subr.bf16.mxu0 0
    %1031 = vmatpush1.bf16.msra.mxu0 0
    %1032 = vmatprep.subr.bf16.mxu0 0
    %1033 = vmatpush1.bf16.msra.mxu0 0
    %1034 = vmatprep.subr.bf16.mxu0 0
    %1035 = vmatpush1.bf16.msra.mxu0 0
    %1036 = vmatprep.subr.bf16.mxu0 0
    %1037 = vmatpush1.bf16.msra.mxu0 0
    %1038 = vmatprep.subr.bf16.mxu0 0
    %1039 = vmatpush1.bf16.msra.mxu0 0
    %1040 = vmatprep.subr.bf16.mxu0 0
    %1041 = vmatpush1.bf16.msra.mxu0 0
    %1042 = vmatprep.subr.bf16.mxu0 0
    %1043 = vmatpush1.bf16.msra.mxu0 0
    %1044 = vmatprep.subr.bf16.mxu0 0
    %1045 = vmatpush1.bf16.msra.mxu0 0
    %1046 = vmatprep.mubr.bf16.mxu0 0
    %1047 = vmatmul.mubr.bf16.gmra.mrb[0].mxu0 %v1009
    %v1048 = vpop.f32.mrb[0].mxu0
    %v1049 = vadd.f32 0.0, %v1048
    %v1050 = vpop.f32.mrb[0].mxu0
    %v1051 = vpop.f32.mrb[0].mxu0
    %v1052 = vadd.f32 0.0, %v1051
    %v1053 = vpop.f32.mrb[0].mxu0
    %1054 = vmatprep.mubr.bf16.mxu0 0
    %1055 = vmatmul.mubr.bf16.gmra.mrb[0].mxu0 %v1012
    %v1056 = vpop.f32.mrb[0].mxu0
    %v1057 = vadd.f32 0.0, %v1056
    %v1058 = vpop.f32.mrb[0].mxu0
    %v1059 = vpop.f32.mrb[0].mxu0
    %v1060 = vadd.f32 0.0, %v1059
    %v1061 = vpop.f32.mrb[0].mxu0
    %1062 = vdwg.mxu0
    %v1065 = vunpack.c.l.b16 %v876
    %v1066 = vunpack.c.l.b16 %v877
    %v1067 = vpack.c.b16 %v1066, %v1065
    %1069 = vmatprep.subr.bf16.mxu0 0
    %1070 = vmatpush1.bf16.msra.mxu0 %v1067
    %1071 = vmatprep.subr.bf16.mxu0 0
    %1072 = vmatpush1.bf16.msra.mxu0 0
    %1073 = vmatprep.subr.bf16.mxu0 0
    %1074 = vmatpush1.bf16.msra.mxu0 0
    %1075 = vmatprep.subr.bf16.mxu0 0
    %1076 = vmatpush1.bf16.msra.mxu0 0
    %1077 = vmatprep.subr.bf16.mxu0 0
    %1078 = vmatpush1.bf16.msra.mxu0 0
    %1079 = vmatprep.subr.bf16.mxu0 0
    %1080 = vmatpush1.bf16.msra.mxu0 0
    %1081 = vmatprep.subr.bf16.mxu0 0
    %1082 = vmatpush1.bf16.msra.mxu0 0
    %1083 = vmatprep.subr.bf16.mxu0 0
    %1084 = vmatpush1.bf16.msra.mxu0 0
    %1085 = vmatprep.subr.bf16.mxu0 0
    %1086 = vmatpush1.bf16.msra.mxu0 0
    %1087 = vmatprep.subr.bf16.mxu0 0
    %1088 = vmatpush1.bf16.msra.mxu0 0
    %1089 = vmatprep.subr.bf16.mxu0 0
    %1090 = vmatpush1.bf16.msra.mxu0 0
    %1091 = vmatprep.subr.bf16.mxu0 0
    %1092 = vmatpush1.bf16.msra.mxu0 0
    %1093 = vmatprep.subr.bf16.mxu0 0
    %1094 = vmatpush1.bf16.msra.mxu0 0
    %1095 = vmatprep.subr.bf16.mxu0 0
    %1096 = vmatpush1.bf16.msra.mxu0 0
    %1097 = vmatprep.subr.bf16.mxu0 0
    %1098 = vmatpush1.bf16.msra.mxu0 0
    %1099 = vmatprep.subr.bf16.mxu0 0
    %1100 = vmatpush1.bf16.msra.mxu0 0
    %1101 = vmatprep.mubr.bf16.mxu0 0
    %1102 = vmatmul.mubr.bf16.gmra.mrb[0].mxu0 %v1009
    %v1103 = vpop.f32.mrb[0].mxu0
    %v1104 = vadd.f32 0.0, %v1103
    %v1105 = vpop.f32.mrb[0].mxu0
    %v1106 = vpop.f32.mrb[0].mxu0
    %v1107 = vadd.f32 0.0, %v1106
    %v1108 = vpop.f32.mrb[0].mxu0
    %1109 = vmatprep.mubr.bf16.mxu0 0
    %1110 = vmatmul.mubr.bf16.gmra.mrb[0].mxu0 %v1012
    %v1111 = vpop.f32.mrb[0].mxu0
    %v1112 = vadd.f32 0.0, %v1111
    %v1113 = vpop.f32.mrb[0].mxu0
    %v1114 = vpop.f32.mrb[0].mxu0
    %v1115 = vadd.f32 0.0, %v1114
    %v1116 = vpop.f32.mrb[0].mxu0
    %1117 = vdwg.mxu0
    %v1118 = vpack.c.bf16 %v855, %v854
    %v1119 = vpack.c.bf16 %v857, %v856
    %v1120 = vpack.c.bf16 %v859, %v858
    %v1121 = vpack.c.bf16 %v861, %v860
    %v1122 = vpack.c.bf16 %v863, %v862
    %v1123 = vpack.c.bf16 %v865, %v864
    %v1124 = vpack.c.bf16 %v867, %v866
    %v1125 = vpack.c.bf16 %v869, %v868
    %v1126 = vpack.c.bf16 %v932, %v929
    %v1127 = vpack.c.bf16 %v940, %v937
    %v1128 = vpack.c.bf16 %v987, %v984
    %v1129 = vpack.c.bf16 %v995, %v992
    %v1130 = vpack.c.bf16 %v1052, %v1049
    %v1131 = vpack.c.bf16 %v1060, %v1057
    %v1132 = vpack.c.bf16 %v1107, %v1104
    %v1133 = vpack.c.bf16 %v1115, %v1112
    %v1135 = vsel %vm693, %v1118, 0
    %v1138 = vsel %vm693, %v1119, 0
    %1140 = vmatprep.subr.bf16.mxu0 0
    %1141 = vmatpush1.bf16.msra.mxu0 %v1126
    %1142 = vmatprep.subr.bf16.mxu0 0
    %1143 = vmatpush1.bf16.msra.mxu0 %v1127
    %1144 = vmatprep.subr.bf16.mxu0 0
    %1145 = vmatpush1.bf16.msra.mxu0 0
    %1146 = vmatprep.subr.bf16.mxu0 0
    %1147 = vmatpush1.bf16.msra.mxu0 0
    %1148 = vmatprep.subr.bf16.mxu0 0
    %1149 = vmatpush1.bf16.msra.mxu0 0
    %1150 = vmatprep.subr.bf16.mxu0 0
    %1151 = vmatpush1.bf16.msra.mxu0 0
    %1152 = vmatprep.subr.bf16.mxu0 0
    %1153 = vmatpush1.bf16.msra.mxu0 0
    %1154 = vmatprep.subr.bf16.mxu0 0
    %1155 = vmatpush1.bf16.msra.mxu0 0
    %1156 = vmatprep.subr.bf16.mxu0 0
    %1157 = vmatpush1.bf16.msra.mxu0 0
    %1158 = vmatprep.subr.bf16.mxu0 0
    %1159 = vmatpush1.bf16.msra.mxu0 0
    %1160 = vmatprep.subr.bf16.mxu0 0
    %1161 = vmatpush1.bf16.msra.mxu0 0
    %1162 = vmatprep.subr.bf16.mxu0 0
    %1163 = vmatpush1.bf16.msra.mxu0 0
    %1164 = vmatprep.subr.bf16.mxu0 0
    %1165 = vmatpush1.bf16.msra.mxu0 0
    %1166 = vmatprep.subr.bf16.mxu0 0
    %1167 = vmatpush1.bf16.msra.mxu0 0
    %1168 = vmatprep.subr.bf16.mxu0 0
    %1169 = vmatpush1.bf16.msra.mxu0 0
    %1170 = vmatprep.subr.bf16.mxu0 0
    %1171 = vmatpush1.bf16.msra.mxu0 0
    %1172 = vmatprep.mubr.bf16.mxu0 0
    %1173 = vmatmul.mubr.bf16.gmra.mrb[0].mxu0 %v1135
    %v1174 = vpop.f32.mrb[0].mxu0
    %v1175 = vadd.f32 0.0, %v1174
    %v1176 = vpop.f32.mrb[0].mxu0
    %v1177 = vpop.f32.mrb[0].mxu0
    %v1178 = vadd.f32 0.0, %v1177
    %v1179 = vpop.f32.mrb[0].mxu0
    %1180 = vmatprep.mubr.bf16.mxu0 0
    %1181 = vmatmul.mubr.bf16.gmra.mrb[0].mxu0 %v1138
    %v1182 = vpop.f32.mrb[0].mxu0
    %v1183 = vadd.f32 0.0, %v1182
    %v1184 = vpop.f32.mrb[0].mxu0
    %v1185 = vpop.f32.mrb[0].mxu0
    %v1186 = vadd.f32 0.0, %v1185
    %v1187 = vpop.f32.mrb[0].mxu0
    %1188 = vdwg.mxu0
    %v1190 = vsel %vm693, %v1120, 0
    %v1193 = vsel %vm693, %v1121, 0
    %1195 = vmatprep.subr.bf16.mxu0 0
    %1196 = vmatpush1.bf16.msra.mxu0 %v1128
    %1197 = vmatprep.subr.bf16.mxu0 0
    %1198 = vmatpush1.bf16.msra.mxu0 %v1129
    %1199 = vmatprep.subr.bf16.mxu0 0
    %1200 = vmatpush1.bf16.msra.mxu0 0
    %1201 = vmatprep.subr.bf16.mxu0 0
    %1202 = vmatpush1.bf16.msra.mxu0 0
    %1203 = vmatprep.subr.bf16.mxu0 0
    %1204 = vmatpush1.bf16.msra.mxu0 0
    %1205 = vmatprep.subr.bf16.mxu0 0
    %1206 = vmatpush1.bf16.msra.mxu0 0
    %1207 = vmatprep.subr.bf16.mxu0 0
    %1208 = vmatpush1.bf16.msra.mxu0 0
    %1209 = vmatprep.subr.bf16.mxu0 0
    %1210 = vmatpush1.bf16.msra.mxu0 0
    %1211 = vmatprep.subr.bf16.mxu0 0
    %1212 = vmatpush1.bf16.msra.mxu0 0
    %1213 = vmatprep.subr.bf16.mxu0 0
    %1214 = vmatpush1.bf16.msra.mxu0 0
    %1215 = vmatprep.subr.bf16.mxu0 0
    %1216 = vmatpush1.bf16.msra.mxu0 0
    %1217 = vmatprep.subr.bf16.mxu0 0
    %1218 = vmatpush1.bf16.msra.mxu0 0
    %1219 = vmatprep.subr.bf16.mxu0 0
    %1220 = vmatpush1.bf16.msra.mxu0 0
    %1221 = vmatprep.subr.bf16.mxu0 0
    %1222 = vmatpush1.bf16.msra.mxu0 0
    %1223 = vmatprep.subr.bf16.mxu0 0
    %1224 = vmatpush1.bf16.msra.mxu0 0
    %1225 = vmatprep.subr.bf16.mxu0 0
    %1226 = vmatpush1.bf16.msra.mxu0 0
    %1227 = vmatprep.mubr.bf16.mxu0 0
    %1228 = vmatmul.mubr.bf16.gmra.mrb[0].mxu0 %v1190
    %v1229 = vpop.f32.mrb[0].mxu0
    %v1230 = vadd.f32 0.0, %v1229
    %v1231 = vpop.f32.mrb[0].mxu0
    %v1232 = vpop.f32.mrb[0].mxu0
    %v1233 = vadd.f32 0.0, %v1232
    %v1234 = vpop.f32.mrb[0].mxu0
    %1235 = vmatprep.mubr.bf16.mxu0 0
    %1236 = vmatmul.mubr.bf16.gmra.mrb[0].mxu0 %v1193
    %v1237 = vpop.f32.mrb[0].mxu0
    %v1238 = vadd.f32 0.0, %v1237
    %v1239 = vpop.f32.mrb[0].mxu0
    %v1240 = vpop.f32.mrb[0].mxu0
    %v1241 = vadd.f32 0.0, %v1240
    %v1242 = vpop.f32.mrb[0].mxu0
    %1243 = vdwg.mxu0
    %v1245 = vsel %vm693, %v1122, 0
    %v1248 = vsel %vm693, %v1123, 0
    %1250 = vmatprep.subr.bf16.mxu0 0
    %1251 = vmatpush1.bf16.msra.mxu0 %v1130
    %1252 = vmatprep.subr.bf16.mxu0 0
    %1253 = vmatpush1.bf16.msra.mxu0 %v1131
    %1254 = vmatprep.subr.bf16.mxu0 0
    %1255 = vmatpush1.bf16.msra.mxu0 0
    %1256 = vmatprep.subr.bf16.mxu0 0
    %1257 = vmatpush1.bf16.msra.mxu0 0
    %1258 = vmatprep.subr.bf16.mxu0 0
    %1259 = vmatpush1.bf16.msra.mxu0 0
    %1260 = vmatprep.subr.bf16.mxu0 0
    %1261 = vmatpush1.bf16.msra.mxu0 0
    %1262 = vmatprep.subr.bf16.mxu0 0
    %1263 = vmatpush1.bf16.msra.mxu0 0
    %1264 = vmatprep.subr.bf16.mxu0 0
    %1265 = vmatpush1.bf16.msra.mxu0 0
    %1266 = vmatprep.subr.bf16.mxu0 0
    %1267 = vmatpush1.bf16.msra.mxu0 0
    %1268 = vmatprep.subr.bf16.mxu0 0
    %1269 = vmatpush1.bf16.msra.mxu0 0
    %1270 = vmatprep.subr.bf16.mxu0 0
    %1271 = vmatpush1.bf16.msra.mxu0 0
    %1272 = vmatprep.subr.bf16.mxu0 0
    %1273 = vmatpush1.bf16.msra.mxu0 0
    %1274 = vmatprep.subr.bf16.mxu0 0
    %1275 = vmatpush1.bf16.msra.mxu0 0
    %1276 = vmatprep.subr.bf16.mxu0 0
    %1277 = vmatpush1.bf16.msra.mxu0 0
    %1278 = vmatprep.subr.bf16.mxu0 0
    %1279 = vmatpush1.bf16.msra.mxu0 0
    %1280 = vmatprep.subr.bf16.mxu0 0
    %1281 = vmatpush1.bf16.msra.mxu0 0
    %1282 = vmatprep.mubr.bf16.mxu0 0
    %1283 = vmatmul.mubr.bf16.gmra.mrb[0].mxu0 %v1245
    %v1284 = vpop.f32.mrb[0].mxu0
    %v1285 = vadd.f32 0.0, %v1284
    %v1286 = vpop.f32.mrb[0].mxu0
    %v1287 = vpop.f32.mrb[0].mxu0
    %v1288 = vadd.f32 0.0, %v1287
    %v1289 = vpop.f32.mrb[0].mxu0
    %1290 = vmatprep.mubr.bf16.mxu0 0
    %1291 = vmatmul.mubr.bf16.gmra.mrb[0].mxu0 %v1248
    %v1292 = vpop.f32.mrb[0].mxu0
    %v1293 = vadd.f32 0.0, %v1292
    %v1294 = vpop.f32.mrb[0].mxu0
    %v1295 = vpop.f32.mrb[0].mxu0
    %v1296 = vadd.f32 0.0, %v1295
    %v1297 = vpop.f32.mrb[0].mxu0
    %1298 = vdwg.mxu0
    %v1300 = vsel %vm693, %v1124, 0
    %v1303 = vsel %vm693, %v1125, 0
    %1305 = vmatprep.subr.bf16.mxu0 0
    %1306 = vmatpush1.bf16.msra.mxu0 %v1132
    %1307 = vmatprep.subr.bf16.mxu0 0
    %1308 = vmatpush1.bf16.msra.mxu0 %v1133
    %1309 = vmatprep.subr.bf16.mxu0 0
    %1310 = vmatpush1.bf16.msra.mxu0 0
    %1311 = vmatprep.subr.bf16.mxu0 0
    %1312 = vmatpush1.bf16.msra.mxu0 0
    %1313 = vmatprep.subr.bf16.mxu0 0
    %1314 = vmatpush1.bf16.msra.mxu0 0
    %1315 = vmatprep.subr.bf16.mxu0 0
    %1316 = vmatpush1.bf16.msra.mxu0 0
    %1317 = vmatprep.subr.bf16.mxu0 0
    %1318 = vmatpush1.bf16.msra.mxu0 0
    %1319 = vmatprep.subr.bf16.mxu0 0
    %1320 = vmatpush1.bf16.msra.mxu0 0
    %1321 = vmatprep.subr.bf16.mxu0 0
    %1322 = vmatpush1.bf16.msra.mxu0 0
    %1323 = vmatprep.subr.bf16.mxu0 0
    %1324 = vmatpush1.bf16.msra.mxu0 0
    %1325 = vmatprep.subr.bf16.mxu0 0
    %1326 = vmatpush1.bf16.msra.mxu0 0
    %1327 = vmatprep.subr.bf16.mxu0 0
    %1328 = vmatpush1.bf16.msra.mxu0 0
    %1329 = vmatprep.subr.bf16.mxu0 0
    %1330 = vmatpush1.bf16.msra.mxu0 0
    %1331 = vmatprep.subr.bf16.mxu0 0
    %1332 = vmatpush1.bf16.msra.mxu0 0
    %1333 = vmatprep.subr.bf16.mxu0 0
    %1334 = vmatpush1.bf16.msra.mxu0 0
    %1335 = vmatprep.subr.bf16.mxu0 0
    %1336 = vmatpush1.bf16.msra.mxu0 0
    %1337 = vmatprep.mubr.bf16.mxu0 0
    %1338 = vmatmul.mubr.bf16.gmra.mrb[0].mxu0 %v1300
    %v1339 = vpop.f32.mrb[0].mxu0
    %v1340 = vadd.f32 0.0, %v1339
    %v1341 = vpop.f32.mrb[0].mxu0
    %v1342 = vpop.f32.mrb[0].mxu0
    %v1343 = vadd.f32 0.0, %v1342
    %v1344 = vpop.f32.mrb[0].mxu0
    %1345 = vmatprep.mubr.bf16.mxu0 0
    %1346 = vmatmul.mubr.bf16.gmra.mrb[0].mxu0 %v1303
    %v1347 = vpop.f32.mrb[0].mxu0
    %v1348 = vadd.f32 0.0, %v1347
    %v1349 = vpop.f32.mrb[0].mxu0
    %v1350 = vpop.f32.mrb[0].mxu0
    %v1351 = vadd.f32 0.0, %v1350
    %v1352 = vpop.f32.mrb[0].mxu0
    %1353 = vdwg.mxu0
    %v1354 = vsel %vm92, %v1175, 0.0
    %v1355 = vsel %vm92, %v1230, 0.0
    %v1356 = vadd.f32 %v1354, %v1355
    %v1357 = vsel %vm92, %v1285, 0.0
    %v1358 = vadd.f32 %v1356, %v1357
    %v1359 = vsel %vm92, %v1340, 0.0
    %v1360 = vadd.f32 %v1358, %v1359
    %v1361 = vsel %vm92, %v1178, 0.0
    %v1362 = vsel %vm92, %v1233, 0.0
    %v1363 = vadd.f32 %v1361, %v1362
    %v1364 = vsel %vm92, %v1288, 0.0
    %v1365 = vadd.f32 %v1363, %v1364
    %v1366 = vsel %vm92, %v1343, 0.0
    %v1367 = vadd.f32 %v1365, %v1366
    %v1368 = vsel %vm92, %v1183, 0.0
    %v1369 = vsel %vm92, %v1238, 0.0
    %v1370 = vadd.f32 %v1368, %v1369
    %v1371 = vsel %vm92, %v1293, 0.0
    %v1372 = vadd.f32 %v1370, %v1371
    %v1373 = vsel %vm92, %v1348, 0.0
    %v1374 = vadd.f32 %v1372, %v1373
    %v1375 = vsel %vm92, %v1186, 0.0
    %v1376 = vsel %vm92, %v1241, 0.0
    %v1377 = vadd.f32 %v1375, %v1376
    %v1378 = vsel %vm92, %v1296, 0.0
    %v1379 = vadd.f32 %v1377, %v1378
    %v1380 = vsel %vm92, %v1351, 0.0
    %v1381 = vadd.f32 %v1379, %v1380
    %1382 = vst.msk [vmem:[#allocation2] sm:$0xff] %vm92, %v1360
    %1383 = vst.msk [vmem:[#allocation2 + $0x8] sm:$0xff] %vm92, %v1367
    %1384 = vst.msk [vmem:[#allocation2 + $0x10] sm:$0xff] %vm92, %v1374
    %1385 = vst.msk [vmem:[#allocation2 + $0x18] sm:$0xff] %vm92, %v1381
    // Predicated region
    $region30: #{forward.1} parent=1 // pred_check
      _
    $region31: #{forward.1} parent=1 // pred_check_branch
      %1387 = sbr.rel (0) target = $region33
    $region32: #{forward.1} parent=1 // pred_region
      %s1389 = ssub.s32 512, 512
      %1390 = vsyncadd [#allocation3], %s1389
      %s1391 = sshll.u32 [#allocation2], 4
      %s1392 = int_to_ptr.vmem [resolvable:$true] %s1391
      %1397 = dma.vmem_to_hbm [thread:$0]  %s1392, 512, %s7, [#allocation3], 128, 128, 8
    $region33: #{forward.1} parent=1 // pred_fallthru
      _
    // Predicated region
    $region34: #{forward.1} parent=1 // pred_check
      _
    $region35: #{forward.1} parent=1 // pred_check_branch
      %1399 = sbr.rel (0) target = $region37
    $region36: #{forward.1} parent=1 // pred_region
      _
    $region37: #{forward.1} parent=1 // pred_fallthru
      _
    // Predicated region
    $region38: #{forward.1} parent=1 // pred_check
      _
    $region39: #{forward.1} parent=1 // pred_check_branch
      %1401 = sbr.rel (0) target = $region41
    $region40: #{forward.1} parent=1 // pred_region
      %1402 = dma.done [#allocation3], 512
    $region41: #{forward.1} parent=1 // pred_fallthru
      _
    // Predicated region
    $region42: #{forward.1} parent=1 // pred_check
      _
    $region43: #{forward.1} parent=1 // pred_check_branch
      %1404 = sbr.rel (0) target = $region45
    $region44: #{forward.1} parent=1 // pred_region
      _
    $region45: #{forward.1} parent=1 // pred_fallthru
      _
    %1405 = vsyncpa [#allocation3], 1

</llo_original>
